<compile_context>
chip_gen: v7x
topology: tpu7x:2x2x1
jax: 0.10.0
libtpu: 0.0.40
codegen_flags: <defaults>
</compile_context>

<pallas_src>
import functools

import jax
import jax.numpy as jnp
from jax.experimental import pallas as pl
from jax.experimental.pallas import tpu as pltpu


def encoder_kernel(*refs, num_mlp_layers, mlp_outs, B, T, H):
    """Fused GRU(1 layer) + MLP forward; single invocation, all data in VMEM.

    refs = [x2d (B*T,Din), w_i (Din,3H), w_h (H,3H),
            consts (3,3H) = [bias_i; bias_h(=0,0,b_hn); h0|0|0],
            (mlp_pack (L,H+1,Wmax) if L>0),
            out (B*T,O)]
    """
    if num_mlp_layers:
        x_ref, wi_ref, wh_ref, c_ref, mlp_ref, out_ref = refs
    else:
        x_ref, wi_ref, wh_ref, c_ref, out_ref = refs

    H3 = 3 * H

    # ---- Hoisted fused input projection: one GEMM, all gates, all B*T rows.
    gi = (jnp.dot(x_ref[...], wi_ref[...], preferred_element_type=jnp.float32)
          + c_ref[0:1, :])                       # (B*T, 3H), gate order r|z|n
    # Free reshape here because T is a sublane multiple (perf-only assumption).
    gi = gi.reshape(B, T, H3)

    # Hoist constant loads / broadcasts out of the recurrence.
    wh = wh_ref[...]                                         # (H, 3H)
    bias_h = jnp.broadcast_to(c_ref[1:2, :], (B, H3))        # [0 | 0 | b_hn]
    h = jnp.broadcast_to(c_ref[2:3, :H], (B, H))             # h0 (expanded)

    # ---- Sequential GRU recurrence (statically unrolled; T is small). ----
    hs = []
    for t in range(T):
        # Single fused MXU push per step: gh = [Whr h | Whz h | Whn h + b_hn].
        gh = jnp.dot(h, wh, preferred_element_type=jnp.float32) + bias_h
        gi_t = gi[:, t, :]                                   # (B, 3H)
        # One EUP push over the fused [r|z] lanes.
        rz = jax.nn.sigmoid(gi_t[:, :2 * H] + gh[:, :2 * H])
        r = rz[:, :H]
        z = rz[:, H:]
        n = jnp.tanh(gi_t[:, 2 * H:] + r * gh[:, 2 * H:])
        h = n + z * (h - n)                                  # == (1-z)*n + z*h
        hs.append(h)

    # Assemble (B*T, H) hidden sequence directly in vregs (no VMEM scratch).
    a = jnp.stack(hs, axis=1).reshape(B * T, H)

    # ---- MLP head, batched over all B*T hidden states (one GEMM chain). ----
    for layer in range(num_mlp_layers):
        o = mlp_outs[layer]
        w = mlp_ref[layer, :H, :o]                # (H, o) static slice
        b = mlp_ref[layer, H:H + 1, :o]           # (1, o)
        a = jnp.dot(a, w, preferred_element_type=jnp.float32) + b
        if layer < num_mlp_layers - 1:
            a = jnp.where(a >= 0.0, a, 0.01 * a)  # LeakyReLU(0.01), torch default

    out_ref[...] = a.astype(out_ref.dtype)


@jax.jit
def time_series_encoder_forward(x, gru_params, h0_param, mlp_params):
    """x: (B, T, input_size) f32 -> (B, T, output_size) f32."""
    B, T, _ = x.shape
    w_ih, w_hh, b_ih, b_hh = gru_params
    H = w_hh.shape[1]
    f32 = jnp.float32

    w_ih = jnp.asarray(w_ih, f32)     # (3H, Din), gate rows ordered r|z|n
    w_hh = jnp.asarray(w_hh, f32)     # (3H, H)
    b_ih = jnp.asarray(b_ih, f32)
    b_hh = jnp.asarray(b_hh, f32)

    # Fused, transposed gate weights: columns ordered [r | z | n].
    w_i = w_ih.T                                              # (Din, 3H)
    w_h = w_hh.T                                              # (H, 3H)

    # Const block (3, 3H):
    #   row 0: input-side bias  [b_ir+b_hr | b_iz+b_hz | b_in]
    #   row 1: hidden-side bias [0 | 0 | b_hn]   (added to gh each step)
    #   row 2: [h0 | 0 | 0]
    bias_i = jnp.concatenate([b_ih[:2 * H] + b_hh[:2 * H], b_ih[2 * H:]])
    bias_h = jnp.concatenate([jnp.zeros((2 * H,), f32), b_hh[2 * H:]])
    h0_row = jnp.asarray(h0_param, f32).reshape(1, H)
    h0_pad = jnp.concatenate([h0_row, jnp.zeros((1, 2 * H), f32)], axis=1)
    consts = jnp.concatenate([bias_i[None, :], bias_h[None, :], h0_pad], axis=0)

    # Packed MLP params: (L, H+1, Wmax); rows 0..H-1 = W^T, row H = bias.
    L = len(mlp_params)
    if L:
        mlp_outs = tuple(int(w.shape[0]) for w, _ in mlp_params)
        w_max = max(mlp_outs)
        blocks = []
        for (w, b), o in zip(mlp_params, mlp_outs):
            blk = jnp.concatenate(
                [jnp.asarray(w, f32).T, jnp.asarray(b, f32).reshape(1, o)], axis=0)
            blocks.append(jnp.pad(blk, ((0, 0), (0, w_max - o))))
        mlp_pack = jnp.stack(blocks, axis=0)
        out_dim = mlp_outs[-1]
        extra = [mlp_pack]
    else:
        mlp_outs = ()
        out_dim = H
        extra = []

    x2d = jnp.asarray(x, f32).reshape(B * T, x.shape[-1])
    inputs = [x2d, w_i, w_h, consts] + extra

    kernel = functools.partial(
        encoder_kernel, num_mlp_layers=L, mlp_outs=mlp_outs, B=B, T=T, H=H)
    vmem = pl.BlockSpec(memory_space=pltpu.MemorySpace.VMEM)

    out2d = pl.pallas_call(
        kernel,
        out_shape=jax.ShapeDtypeStruct((B * T, out_dim), jnp.float32),
        in_specs=[vmem] * len(inputs),
        out_specs=vmem,
    )(*inputs)
    return out2d.reshape(B, T, out_dim)


def encoder_reference(x, gru_params, h0_param, mlp_params):
    """Pure-JAX reference matching torch: GRU(batch_first, 1 layer) + MLP."""
    B, T, _ = x.shape
    w_ih, w_hh, b_ih, b_hh = gru_params
    H = w_hh.shape[1]
    h = jnp.broadcast_to(h0_param[0], (B, H)).astype(jnp.float32)
    hs = []
    for t in range(T):
        xt = x[:, t, :].astype(jnp.float32)
        gi = xt @ w_ih.T + b_ih
        gh = h @ w_hh.T + b_hh
        r = jax.nn.sigmoid(gi[:, :H] + gh[:, :H])
        z = jax.nn.sigmoid(gi[:, H:2 * H] + gh[:, H:2 * H])
        n = jnp.tanh(gi[:, 2 * H:] + r * gh[:, 2 * H:])
        h = (1.0 - z) * n + z * h
        hs.append(h)
    a = jnp.stack(hs, axis=1)               # (B, T, H)
    for i, (w, b) in enumerate(mlp_params):
        a = a @ w.T + b
        if i < len(mlp_params) - 1:
            a = jnp.where(a >= 0.0, a, 0.01 * a)
    return a


def init_params(key, input_size, hidden_size, output_size, mlp_num_layer):
    """Deterministic init mirroring torch parameter shapes."""
    bound = 1.0 / float(hidden_size) ** 0.5
    key, k1, k2, k3, k4 = jax.random.split(key, 5)
    w_ih = jax.random.uniform(k1, (3 * hidden_size, input_size), jnp.float32, -bound, bound)
    w_hh = jax.random.uniform(k2, (3 * hidden_size, hidden_size), jnp.float32, -bound, bound)
    b_ih = jax.random.uniform(k3, (3 * hidden_size,), jnp.float32, -bound, bound)
    b_hh = jax.random.uniform(k4, (3 * hidden_size,), jnp.float32, -bound, bound)
    gru_params = (w_ih, w_hh, b_ih, b_hh)

    if mlp_num_layer == 0:
        dims = []
    elif mlp_num_layer == 1:
        dims = [(hidden_size, output_size)]
    else:
        dims = ([(hidden_size, hidden_size)]
                + [(hidden_size, hidden_size)] * (mlp_num_layer - 2)
                + [(hidden_size, output_size)])
    mlp_params = []
    for fan_in, fan_out in dims:
        key, kw, kb = jax.random.split(key, 3)
        lb = 1.0 / float(fan_in) ** 0.5
        w = jax.random.uniform(kw, (fan_out, fan_in), jnp.float32, -lb, lb)
        b = jax.random.uniform(kb, (fan_out,), jnp.float32, -lb, lb)
        mlp_params.append((w, b))
    return gru_params, mlp_params, key


if __name__ == "__main__":
    input_size, hidden_size, output_size = 4, 32, 16
    mlp_num_layer = 2
    batch, seq = 2, 8

    key = jax.random.PRNGKey(0)
    gru_params, mlp_params, key = init_params(
        key, input_size, hidden_size, output_size, mlp_num_layer)
    # The module initializes h0 to zeros; use small nonzero values here so the
    # initial-state path of the kernel is actually exercised.
    key, kh, kx = jax.random.split(key, 3)
    h0_param = 0.1 * jax.random.normal(kh, (1, 1, hidden_size), jnp.float32)
    x = jax.random.normal(kx, (batch, seq, input_size), jnp.float32)

    out = time_series_encoder_forward(x, gru_params, h0_param, mlp_params)
    out = jax.block_until_ready(out)

    ref = encoder_reference(x, gru_params, h0_param, mlp_params)
    assert out.shape == (batch, seq, output_size), out.shape
    max_err = float(jnp.max(jnp.abs(out - ref)))
    assert jnp.allclose(out, ref, rtol=1e-3, atol=1e-4), f"max abs err {max_err}"
    print("KERNEL_OK")
</pallas_src>

<mosaic_0001>
module attributes {stable_mosaic.version = 11 : i64} {
  func.func @encoder_kernel(%arg0: memref<16x4xf32, #tpu.memory_space<vmem>>, %arg1: memref<4x96xf32, #tpu.memory_space<vmem>>, %arg2: memref<32x96xf32, #tpu.memory_space<vmem>>, %arg3: memref<3x96xf32, #tpu.memory_space<vmem>>, %arg4: memref<2x33x32xf32, #tpu.memory_space<vmem>>, %arg5: memref<16x16xf32, #tpu.memory_space<vmem>>) attributes {dimension_semantics = [], scalar_prefetch = 0 : i64, scratch_operands = 0 : i64, tpu.core_type = #tpu.core_type<tc>} {
    %c0 = arith.constant 0 : index
    %c0_0 = arith.constant 0 : index
    %0 = vector.load %arg0[%c0, %c0_0] : memref<16x4xf32, #tpu.memory_space<vmem>>, vector<16x4xf32>
    %c0_1 = arith.constant 0 : index
    %c0_2 = arith.constant 0 : index
    %1 = vector.load %arg1[%c0_1, %c0_2] : memref<4x96xf32, #tpu.memory_space<vmem>>, vector<4x96xf32>
    %cst = arith.constant dense<0.000000e+00> : vector<16x96xf32>
    %2 = tpu.matmul %0, %1, %cst {dimension_numbers = #tpu.dot_dimension_numbers<[1], [0], [0], [1], [0, 0, 1, 1], [], []>} : vector<16x4xf32>, vector<4x96xf32>, vector<16x96xf32> -> vector<16x96xf32>
    %c0_3 = arith.constant 0 : index
    %c0_4 = arith.constant 0 : index
    %3 = vector.load %arg3[%c0_3, %c0_4] : memref<3x96xf32, #tpu.memory_space<vmem>>, vector<1x96xf32>
    %4 = vector.broadcast %3 : vector<1x96xf32> to vector<16x96xf32>
    %5 = arith.addf %2, %4 : vector<16x96xf32>
    %6 = vector.shape_cast %5 : vector<16x96xf32> to vector<2x8x96xf32>
    %c0_5 = arith.constant 0 : index
    %c0_6 = arith.constant 0 : index
    %7 = vector.load %arg2[%c0_5, %c0_6] : memref<32x96xf32, #tpu.memory_space<vmem>>, vector<32x96xf32>
    %c1 = arith.constant 1 : index
    %c0_7 = arith.constant 0 : index
    %8 = vector.load %arg3[%c1, %c0_7] : memref<3x96xf32, #tpu.memory_space<vmem>>, vector<1x96xf32>
    %9 = vector.shape_cast %8 : vector<1x96xf32> to vector<1x96xf32>
    %10 = vector.broadcast %9 : vector<1x96xf32> to vector<2x96xf32>
    %c2 = arith.constant 2 : index
    %c0_8 = arith.constant 0 : index
    %11 = vector.load %arg3[%c2, %c0_8] : memref<3x96xf32, #tpu.memory_space<vmem>>, vector<1x32xf32>
    %12 = vector.shape_cast %11 : vector<1x32xf32> to vector<1x32xf32>
    %13 = vector.broadcast %12 : vector<1x32xf32> to vector<2x32xf32>
    %cst_9 = arith.constant dense<0.000000e+00> : vector<2x96xf32>
    %14 = tpu.matmul %13, %7, %cst_9 {dimension_numbers = #tpu.dot_dimension_numbers<[1], [0], [0], [1], [0, 0, 1, 1], [], []>} : vector<2x32xf32>, vector<32x96xf32>, vector<2x96xf32> -> vector<2x96xf32>
    %15 = arith.addf %14, %10 : vector<2x96xf32>
    %16 = vector.extract_strided_slice %6 {offsets = [0, 0, 0], sizes = [2, 1, 96], strides = [1, 1, 1]} : vector<2x8x96xf32> to vector<2x1x96xf32>
    %17 = vector.shape_cast %16 : vector<2x1x96xf32> to vector<2x96xf32>
    %18 = vector.extract_strided_slice %17 {offsets = [0, 0], sizes = [2, 64], strides = [1, 1]} : vector<2x96xf32> to vector<2x64xf32>
    %19 = vector.extract_strided_slice %15 {offsets = [0, 0], sizes = [2, 64], strides = [1, 1]} : vector<2x96xf32> to vector<2x64xf32>
    %20 = arith.addf %18, %19 : vector<2x64xf32>
    %21 = arith.negf %20 : vector<2x64xf32>
    %22 = math.exp %21 : vector<2x64xf32>
    %cst_10 = arith.constant 1.000000e+00 : f32
    %23 = vector.broadcast %cst_10 : f32 to vector<2x64xf32>
    %24 = arith.addf %23, %22 : vector<2x64xf32>
    %25 = arith.divf %23, %24 : vector<2x64xf32>
    %26 = vector.extract_strided_slice %25 {offsets = [0, 0], sizes = [2, 32], strides = [1, 1]} : vector<2x64xf32> to vector<2x32xf32>
    %27 = vector.extract_strided_slice %25 {offsets = [0, 32], sizes = [2, 32], strides = [1, 1]} : vector<2x64xf32> to vector<2x32xf32>
    %28 = vector.extract_strided_slice %17 {offsets = [0, 64], sizes = [2, 32], strides = [1, 1]} : vector<2x96xf32> to vector<2x32xf32>
    %29 = vector.extract_strided_slice %15 {offsets = [0, 64], sizes = [2, 32], strides = [1, 1]} : vector<2x96xf32> to vector<2x32xf32>
    %30 = arith.mulf %26, %29 : vector<2x32xf32>
    %31 = arith.addf %28, %30 : vector<2x32xf32>
    %32 = math.tanh %31 : vector<2x32xf32>
    %33 = arith.subf %13, %32 : vector<2x32xf32>
    %34 = arith.mulf %27, %33 : vector<2x32xf32>
    %35 = arith.addf %32, %34 : vector<2x32xf32>
    %cst_11 = arith.constant dense<0.000000e+00> : vector<2x96xf32>
    %36 = tpu.matmul %35, %7, %cst_11 {dimension_numbers = #tpu.dot_dimension_numbers<[1], [0], [0], [1], [0, 0, 1, 1], [], []>} : vector<2x32xf32>, vector<32x96xf32>, vector<2x96xf32> -> vector<2x96xf32>
    %37 = arith.addf %36, %10 : vector<2x96xf32>
    %38 = vector.extract_strided_slice %6 {offsets = [0, 1, 0], sizes = [2, 1, 96], strides = [1, 1, 1]} : vector<2x8x96xf32> to vector<2x1x96xf32>
    %39 = vector.shape_cast %38 : vector<2x1x96xf32> to vector<2x96xf32>
    %40 = vector.extract_strided_slice %39 {offsets = [0, 0], sizes = [2, 64], strides = [1, 1]} : vector<2x96xf32> to vector<2x64xf32>
    %41 = vector.extract_strided_slice %37 {offsets = [0, 0], sizes = [2, 64], strides = [1, 1]} : vector<2x96xf32> to vector<2x64xf32>
    %42 = arith.addf %40, %41 : vector<2x64xf32>
    %43 = arith.negf %42 : vector<2x64xf32>
    %44 = math.exp %43 : vector<2x64xf32>
    %cst_12 = arith.constant 1.000000e+00 : f32
    %45 = vector.broadcast %cst_12 : f32 to vector<2x64xf32>
    %46 = arith.addf %45, %44 : vector<2x64xf32>
    %47 = arith.divf %45, %46 : vector<2x64xf32>
    %48 = vector.extract_strided_slice %47 {offsets = [0, 0], sizes = [2, 32], strides = [1, 1]} : vector<2x64xf32> to vector<2x32xf32>
    %49 = vector.extract_strided_slice %47 {offsets = [0, 32], sizes = [2, 32], strides = [1, 1]} : vector<2x64xf32> to vector<2x32xf32>
    %50 = vector.extract_strided_slice %39 {offsets = [0, 64], sizes = [2, 32], strides = [1, 1]} : vector<2x96xf32> to vector<2x32xf32>
    %51 = vector.extract_strided_slice %37 {offsets = [0, 64], sizes = [2, 32], strides = [1, 1]} : vector<2x96xf32> to vector<2x32xf32>
    %52 = arith.mulf %48, %51 : vector<2x32xf32>
    %53 = arith.addf %50, %52 : vector<2x32xf32>
    %54 = math.tanh %53 : vector<2x32xf32>
    %55 = arith.subf %35, %54 : vector<2x32xf32>
    %56 = arith.mulf %49, %55 : vector<2x32xf32>
    %57 = arith.addf %54, %56 : vector<2x32xf32>
    %cst_13 = arith.constant dense<0.000000e+00> : vector<2x96xf32>
    %58 = tpu.matmul %57, %7, %cst_13 {dimension_numbers = #tpu.dot_dimension_numbers<[1], [0], [0], [1], [0, 0, 1, 1], [], []>} : vector<2x32xf32>, vector<32x96xf32>, vector<2x96xf32> -> vector<2x96xf32>
    %59 = arith.addf %58, %10 : vector<2x96xf32>
    %60 = vector.extract_strided_slice %6 {offsets = [0, 2, 0], sizes = [2, 1, 96], strides = [1, 1, 1]} : vector<2x8x96xf32> to vector<2x1x96xf32>
    %61 = vector.shape_cast %60 : vector<2x1x96xf32> to vector<2x96xf32>
    %62 = vector.extract_strided_slice %61 {offsets = [0, 0], sizes = [2, 64], strides = [1, 1]} : vector<2x96xf32> to vector<2x64xf32>
    %63 = vector.extract_strided_slice %59 {offsets = [0, 0], sizes = [2, 64], strides = [1, 1]} : vector<2x96xf32> to vector<2x64xf32>
    %64 = arith.addf %62, %63 : vector<2x64xf32>
    %65 = arith.negf %64 : vector<2x64xf32>
    %66 = math.exp %65 : vector<2x64xf32>
    %cst_14 = arith.constant 1.000000e+00 : f32
    %67 = vector.broadcast %cst_14 : f32 to vector<2x64xf32>
    %68 = arith.addf %67, %66 : vector<2x64xf32>
    %69 = arith.divf %67, %68 : vector<2x64xf32>
    %70 = vector.extract_strided_slice %69 {offsets = [0, 0], sizes = [2, 32], strides = [1, 1]} : vector<2x64xf32> to vector<2x32xf32>
    %71 = vector.extract_strided_slice %69 {offsets = [0, 32], sizes = [2, 32], strides = [1, 1]} : vector<2x64xf32> to vector<2x32xf32>
    %72 = vector.extract_strided_slice %61 {offsets = [0, 64], sizes = [2, 32], strides = [1, 1]} : vector<2x96xf32> to vector<2x32xf32>
    %73 = vector.extract_strided_slice %59 {offsets = [0, 64], sizes = [2, 32], strides = [1, 1]} : vector<2x96xf32> to vector<2x32xf32>
    %74 = arith.mulf %70, %73 : vector<2x32xf32>
    %75 = arith.addf %72, %74 : vector<2x32xf32>
    %76 = math.tanh %75 : vector<2x32xf32>
    %77 = arith.subf %57, %76 : vector<2x32xf32>
    %78 = arith.mulf %71, %77 : vector<2x32xf32>
    %79 = arith.addf %76, %78 : vector<2x32xf32>
    %cst_15 = arith.constant dense<0.000000e+00> : vector<2x96xf32>
    %80 = tpu.matmul %79, %7, %cst_15 {dimension_numbers = #tpu.dot_dimension_numbers<[1], [0], [0], [1], [0, 0, 1, 1], [], []>} : vector<2x32xf32>, vector<32x96xf32>, vector<2x96xf32> -> vector<2x96xf32>
    %81 = arith.addf %80, %10 : vector<2x96xf32>
    %82 = vector.extract_strided_slice %6 {offsets = [0, 3, 0], sizes = [2, 1, 96], strides = [1, 1, 1]} : vector<2x8x96xf32> to vector<2x1x96xf32>
    %83 = vector.shape_cast %82 : vector<2x1x96xf32> to vector<2x96xf32>
    %84 = vector.extract_strided_slice %83 {offsets = [0, 0], sizes = [2, 64], strides = [1, 1]} : vector<2x96xf32> to vector<2x64xf32>
    %85 = vector.extract_strided_slice %81 {offsets = [0, 0], sizes = [2, 64], strides = [1, 1]} : vector<2x96xf32> to vector<2x64xf32>
    %86 = arith.addf %84, %85 : vector<2x64xf32>
    %87 = arith.negf %86 : vector<2x64xf32>
    %88 = math.exp %87 : vector<2x64xf32>
    %cst_16 = arith.constant 1.000000e+00 : f32
    %89 = vector.broadcast %cst_16 : f32 to vector<2x64xf32>
    %90 = arith.addf %89, %88 : vector<2x64xf32>
    %91 = arith.divf %89, %90 : vector<2x64xf32>
    %92 = vector.extract_strided_slice %91 {offsets = [0, 0], sizes = [2, 32], strides = [1, 1]} : vector<2x64xf32> to vector<2x32xf32>
    %93 = vector.extract_strided_slice %91 {offsets = [0, 32], sizes = [2, 32], strides = [1, 1]} : vector<2x64xf32> to vector<2x32xf32>
    %94 = vector.extract_strided_slice %83 {offsets = [0, 64], sizes = [2, 32], strides = [1, 1]} : vector<2x96xf32> to vector<2x32xf32>
    %95 = vector.extract_strided_slice %81 {offsets = [0, 64], sizes = [2, 32], strides = [1, 1]} : vector<2x96xf32> to vector<2x32xf32>
    %96 = arith.mulf %92, %95 : vector<2x32xf32>
    %97 = arith.addf %94, %96 : vector<2x32xf32>
    %98 = math.tanh %97 : vector<2x32xf32>
    %99 = arith.subf %79, %98 : vector<2x32xf32>
    %100 = arith.mulf %93, %99 : vector<2x32xf32>
    %101 = arith.addf %98, %100 : vector<2x32xf32>
    %cst_17 = arith.constant dense<0.000000e+00> : vector<2x96xf32>
    %102 = tpu.matmul %101, %7, %cst_17 {dimension_numbers = #tpu.dot_dimension_numbers<[1], [0], [0], [1], [0, 0, 1, 1], [], []>} : vector<2x32xf32>, vector<32x96xf32>, vector<2x96xf32> -> vector<2x96xf32>
    %103 = arith.addf %102, %10 : vector<2x96xf32>
    %104 = vector.extract_strided_slice %6 {offsets = [0, 4, 0], sizes = [2, 1, 96], strides = [1, 1, 1]} : vector<2x8x96xf32> to vector<2x1x96xf32>
    %105 = vector.shape_cast %104 : vector<2x1x96xf32> to vector<2x96xf32>
    %106 = vector.extract_strided_slice %105 {offsets = [0, 0], sizes = [2, 64], strides = [1, 1]} : vector<2x96xf32> to vector<2x64xf32>
    %107 = vector.extract_strided_slice %103 {offsets = [0, 0], sizes = [2, 64], strides = [1, 1]} : vector<2x96xf32> to vector<2x64xf32>
    %108 = arith.addf %106, %107 : vector<2x64xf32>
    %109 = arith.negf %108 : vector<2x64xf32>
    %110 = math.exp %109 : vector<2x64xf32>
    %cst_18 = arith.constant 1.000000e+00 : f32
    %111 = vector.broadcast %cst_18 : f32 to vector<2x64xf32>
    %112 = arith.addf %111, %110 : vector<2x64xf32>
    %113 = arith.divf %111, %112 : vector<2x64xf32>
    %114 = vector.extract_strided_slice %113 {offsets = [0, 0], sizes = [2, 32], strides = [1, 1]} : vector<2x64xf32> to vector<2x32xf32>
    %115 = vector.extract_strided_slice %113 {offsets = [0, 32], sizes = [2, 32], strides = [1, 1]} : vector<2x64xf32> to vector<2x32xf32>
    %116 = vector.extract_strided_slice %105 {offsets = [0, 64], sizes = [2, 32], strides = [1, 1]} : vector<2x96xf32> to vector<2x32xf32>
    %117 = vector.extract_strided_slice %103 {offsets = [0, 64], sizes = [2, 32], strides = [1, 1]} : vector<2x96xf32> to vector<2x32xf32>
    %118 = arith.mulf %114, %117 : vector<2x32xf32>
    %119 = arith.addf %116, %118 : vector<2x32xf32>
    %120 = math.tanh %119 : vector<2x32xf32>
    %121 = arith.subf %101, %120 : vector<2x32xf32>
    %122 = arith.mulf %115, %121 : vector<2x32xf32>
    %123 = arith.addf %120, %122 : vector<2x32xf32>
    %cst_19 = arith.constant dense<0.000000e+00> : vector<2x96xf32>
    %124 = tpu.matmul %123, %7, %cst_19 {dimension_numbers = #tpu.dot_dimension_numbers<[1], [0], [0], [1], [0, 0, 1, 1], [], []>} : vector<2x32xf32>, vector<32x96xf32>, vector<2x96xf32> -> vector<2x96xf32>
    %125 = arith.addf %124, %10 : vector<2x96xf32>
    %126 = vector.extract_strided_slice %6 {offsets = [0, 5, 0], sizes = [2, 1, 96], strides = [1, 1, 1]} : vector<2x8x96xf32> to vector<2x1x96xf32>
    %127 = vector.shape_cast %126 : vector<2x1x96xf32> to vector<2x96xf32>
    %128 = vector.extract_strided_slice %127 {offsets = [0, 0], sizes = [2, 64], strides = [1, 1]} : vector<2x96xf32> to vector<2x64xf32>
    %129 = vector.extract_strided_slice %125 {offsets = [0, 0], sizes = [2, 64], strides = [1, 1]} : vector<2x96xf32> to vector<2x64xf32>
    %130 = arith.addf %128, %129 : vector<2x64xf32>
    %131 = arith.negf %130 : vector<2x64xf32>
    %132 = math.exp %131 : vector<2x64xf32>
    %cst_20 = arith.constant 1.000000e+00 : f32
    %133 = vector.broadcast %cst_20 : f32 to vector<2x64xf32>
    %134 = arith.addf %133, %132 : vector<2x64xf32>
    %135 = arith.divf %133, %134 : vector<2x64xf32>
    %136 = vector.extract_strided_slice %135 {offsets = [0, 0], sizes = [2, 32], strides = [1, 1]} : vector<2x64xf32> to vector<2x32xf32>
    %137 = vector.extract_strided_slice %135 {offsets = [0, 32], sizes = [2, 32], strides = [1, 1]} : vector<2x64xf32> to vector<2x32xf32>
    %138 = vector.extract_strided_slice %127 {offsets = [0, 64], sizes = [2, 32], strides = [1, 1]} : vector<2x96xf32> to vector<2x32xf32>
    %139 = vector.extract_strided_slice %125 {offsets = [0, 64], sizes = [2, 32], strides = [1, 1]} : vector<2x96xf32> to vector<2x32xf32>
    %140 = arith.mulf %136, %139 : vector<2x32xf32>
    %141 = arith.addf %138, %140 : vector<2x32xf32>
    %142 = math.tanh %141 : vector<2x32xf32>
    %143 = arith.subf %123, %142 : vector<2x32xf32>
    %144 = arith.mulf %137, %143 : vector<2x32xf32>
    %145 = arith.addf %142, %144 : vector<2x32xf32>
    %cst_21 = arith.constant dense<0.000000e+00> : vector<2x96xf32>
    %146 = tpu.matmul %145, %7, %cst_21 {dimension_numbers = #tpu.dot_dimension_numbers<[1], [0], [0], [1], [0, 0, 1, 1], [], []>} : vector<2x32xf32>, vector<32x96xf32>, vector<2x96xf32> -> vector<2x96xf32>
    %147 = arith.addf %146, %10 : vector<2x96xf32>
    %148 = vector.extract_strided_slice %6 {offsets = [0, 6, 0], sizes = [2, 1, 96], strides = [1, 1, 1]} : vector<2x8x96xf32> to vector<2x1x96xf32>
    %149 = vector.shape_cast %148 : vector<2x1x96xf32> to vector<2x96xf32>
    %150 = vector.extract_strided_slice %149 {offsets = [0, 0], sizes = [2, 64], strides = [1, 1]} : vector<2x96xf32> to vector<2x64xf32>
    %151 = vector.extract_strided_slice %147 {offsets = [0, 0], sizes = [2, 64], strides = [1, 1]} : vector<2x96xf32> to vector<2x64xf32>
    %152 = arith.addf %150, %151 : vector<2x64xf32>
    %153 = arith.negf %152 : vector<2x64xf32>
    %154 = math.exp %153 : vector<2x64xf32>
    %cst_22 = arith.constant 1.000000e+00 : f32
    %155 = vector.broadcast %cst_22 : f32 to vector<2x64xf32>
    %156 = arith.addf %155, %154 : vector<2x64xf32>
    %157 = arith.divf %155, %156 : vector<2x64xf32>
    %158 = vector.extract_strided_slice %157 {offsets = [0, 0], sizes = [2, 32], strides = [1, 1]} : vector<2x64xf32> to vector<2x32xf32>
    %159 = vector.extract_strided_slice %157 {offsets = [0, 32], sizes = [2, 32], strides = [1, 1]} : vector<2x64xf32> to vector<2x32xf32>
    %160 = vector.extract_strided_slice %149 {offsets = [0, 64], sizes = [2, 32], strides = [1, 1]} : vector<2x96xf32> to vector<2x32xf32>
    %161 = vector.extract_strided_slice %147 {offsets = [0, 64], sizes = [2, 32], strides = [1, 1]} : vector<2x96xf32> to vector<2x32xf32>
    %162 = arith.mulf %158, %161 : vector<2x32xf32>
    %163 = arith.addf %160, %162 : vector<2x32xf32>
    %164 = math.tanh %163 : vector<2x32xf32>
    %165 = arith.subf %145, %164 : vector<2x32xf32>
    %166 = arith.mulf %159, %165 : vector<2x32xf32>
    %167 = arith.addf %164, %166 : vector<2x32xf32>
    %cst_23 = arith.constant dense<0.000000e+00> : vector<2x96xf32>
    %168 = tpu.matmul %167, %7, %cst_23 {dimension_numbers = #tpu.dot_dimension_numbers<[1], [0], [0], [1], [0, 0, 1, 1], [], []>} : vector<2x32xf32>, vector<32x96xf32>, vector<2x96xf32> -> vector<2x96xf32>
    %169 = arith.addf %168, %10 : vector<2x96xf32>
    %170 = vector.extract_strided_slice %6 {offsets = [0, 7, 0], sizes = [2, 1, 96], strides = [1, 1, 1]} : vector<2x8x96xf32> to vector<2x1x96xf32>
    %171 = vector.shape_cast %170 : vector<2x1x96xf32> to vector<2x96xf32>
    %172 = vector.extract_strided_slice %171 {offsets = [0, 0], sizes = [2, 64], strides = [1, 1]} : vector<2x96xf32> to vector<2x64xf32>
    %173 = vector.extract_strided_slice %169 {offsets = [0, 0], sizes = [2, 64], strides = [1, 1]} : vector<2x96xf32> to vector<2x64xf32>
    %174 = arith.addf %172, %173 : vector<2x64xf32>
    %175 = arith.negf %174 : vector<2x64xf32>
    %176 = math.exp %175 : vector<2x64xf32>
    %cst_24 = arith.constant 1.000000e+00 : f32
    %177 = vector.broadcast %cst_24 : f32 to vector<2x64xf32>
    %178 = arith.addf %177, %176 : vector<2x64xf32>
    %179 = arith.divf %177, %178 : vector<2x64xf32>
    %180 = vector.extract_strided_slice %179 {offsets = [0, 0], sizes = [2, 32], strides = [1, 1]} : vector<2x64xf32> to vector<2x32xf32>
    %181 = vector.extract_strided_slice %179 {offsets = [0, 32], sizes = [2, 32], strides = [1, 1]} : vector<2x64xf32> to vector<2x32xf32>
    %182 = vector.extract_strided_slice %171 {offsets = [0, 64], sizes = [2, 32], strides = [1, 1]} : vector<2x96xf32> to vector<2x32xf32>
    %183 = vector.extract_strided_slice %169 {offsets = [0, 64], sizes = [2, 32], strides = [1, 1]} : vector<2x96xf32> to vector<2x32xf32>
    %184 = arith.mulf %180, %183 : vector<2x32xf32>
    %185 = arith.addf %182, %184 : vector<2x32xf32>
    %186 = math.tanh %185 : vector<2x32xf32>
    %187 = arith.subf %167, %186 : vector<2x32xf32>
    %188 = arith.mulf %181, %187 : vector<2x32xf32>
    %189 = arith.addf %186, %188 : vector<2x32xf32>
    %190 = vector.shape_cast %35 : vector<2x32xf32> to vector<2x1x32xf32>
    %191 = vector.shape_cast %57 : vector<2x32xf32> to vector<2x1x32xf32>
    %192 = vector.shape_cast %79 : vector<2x32xf32> to vector<2x1x32xf32>
    %193 = vector.shape_cast %101 : vector<2x32xf32> to vector<2x1x32xf32>
    %194 = vector.shape_cast %123 : vector<2x32xf32> to vector<2x1x32xf32>
    %195 = vector.shape_cast %145 : vector<2x32xf32> to vector<2x1x32xf32>
    %196 = vector.shape_cast %167 : vector<2x32xf32> to vector<2x1x32xf32>
    %197 = vector.shape_cast %189 : vector<2x32xf32> to vector<2x1x32xf32>
    %198 = tpu.concatenate %190, %191, %192, %193, %194, %195, %196, %197 in 1 : vector<2x1x32xf32>, vector<2x1x32xf32>, vector<2x1x32xf32>, vector<2x1x32xf32>, vector<2x1x32xf32>, vector<2x1x32xf32>, vector<2x1x32xf32>, vector<2x1x32xf32> -> vector<2x8x32xf32>
    %199 = vector.shape_cast %198 : vector<2x8x32xf32> to vector<16x32xf32>
    %c0_25 = arith.constant 0 : index
    %c0_26 = arith.constant 0 : index
    %c0_27 = arith.constant 0 : index
    %200 = vector.load %arg4[%c0_25, %c0_26, %c0_27] : memref<2x33x32xf32, #tpu.memory_space<vmem>>, vector<1x32x32xf32>
    %201 = vector.shape_cast %200 : vector<1x32x32xf32> to vector<32x32xf32>
    %c0_28 = arith.constant 0 : index
    %c32 = arith.constant 32 : index
    %c0_29 = arith.constant 0 : index
    %202 = vector.load %arg4[%c0_28, %c32, %c0_29] : memref<2x33x32xf32, #tpu.memory_space<vmem>>, vector<1x1x32xf32>
    %203 = vector.shape_cast %202 : vector<1x1x32xf32> to vector<1x32xf32>
    %cst_30 = arith.constant dense<0.000000e+00> : vector<16x32xf32>
    %204 = tpu.matmul %199, %201, %cst_30 {dimension_numbers = #tpu.dot_dimension_numbers<[1], [0], [0], [1], [0, 0, 1, 1], [], []>} : vector<16x32xf32>, vector<32x32xf32>, vector<16x32xf32> -> vector<16x32xf32>
    %205 = vector.broadcast %203 : vector<1x32xf32> to vector<16x32xf32>
    %206 = arith.addf %204, %205 : vector<16x32xf32>
    %cst_31 = arith.constant 0.000000e+00 : f32
    %207 = vector.broadcast %cst_31 : f32 to vector<16x32xf32>
    %208 = arith.cmpf oge, %206, %207 : vector<16x32xf32>
    %cst_32 = arith.constant 0.00999999977 : f32
    %209 = vector.broadcast %cst_32 : f32 to vector<16x32xf32>
    %210 = arith.mulf %209, %206 : vector<16x32xf32>
    %211 = arith.select %208, %206, %210 : vector<16x32xi1>, vector<16x32xf32>
    %c1_33 = arith.constant 1 : index
    %c0_34 = arith.constant 0 : index
    %c0_35 = arith.constant 0 : index
    %212 = vector.load %arg4[%c1_33, %c0_34, %c0_35] : memref<2x33x32xf32, #tpu.memory_space<vmem>>, vector<1x32x16xf32>
    %213 = vector.shape_cast %212 : vector<1x32x16xf32> to vector<32x16xf32>
    %c1_36 = arith.constant 1 : index
    %c32_37 = arith.constant 32 : index
    %c0_38 = arith.constant 0 : index
    %214 = vector.load %arg4[%c1_36, %c32_37, %c0_38] : memref<2x33x32xf32, #tpu.memory_space<vmem>>, vector<1x1x16xf32>
    %215 = vector.shape_cast %214 : vector<1x1x16xf32> to vector<1x16xf32>
    %cst_39 = arith.constant dense<0.000000e+00> : vector<16x16xf32>
    %216 = tpu.matmul %211, %213, %cst_39 {dimension_numbers = #tpu.dot_dimension_numbers<[1], [0], [0], [1], [0, 0, 1, 1], [], []>} : vector<16x32xf32>, vector<32x16xf32>, vector<16x16xf32> -> vector<16x16xf32>
    %217 = vector.broadcast %215 : vector<1x16xf32> to vector<16x16xf32>
    %218 = arith.addf %216, %217 : vector<16x16xf32>
    %c0_40 = arith.constant 0 : index
    %c0_41 = arith.constant 0 : index
    %219 = vector.load %arg5[%c0_40, %c0_41] : memref<16x16xf32, #tpu.memory_space<vmem>>, vector<16x16xf32>
    tpu.vector_store %arg5[%c0_40, %c0_41], %218 {strides = array<i32>} : memref<16x16xf32, #tpu.memory_space<vmem>>, vector<16x16xf32>,
    return
  }
}

</mosaic_0001>

<llo_original>
// kernel: time_series_encoder_forward.1
$region0: #{time_series_encoder_forward.1}
  #allocation0 [shape = 'u32[]', space=smem, size = 0x4, offset = 0x4, fixed_abs, tag = 'smem constant byte address 0x4 - core index']
  #allocation1 [shape = 'u32[144,128]{1,0:T(1,128)}', space=vmem, size = 0x12000, scoped, tag = 'internal scratch']
  %s0 = inlined_call_operand.vmem [shape: f32[16,4], index: 0, kind: input, shape index: {}]
  %s1 = inlined_call_operand.vmem [shape: f32[4,96], index: 1, kind: input, shape index: {}]
  %s2 = inlined_call_operand.vmem [shape: f32[32,96], index: 2, kind: input, shape index: {}]
  %s3 = inlined_call_operand.vmem [shape: f32[3,96], index: 3, kind: input, shape index: {}]
  %s4 = inlined_call_operand.vmem [shape: f32[2,33,32], index: 4, kind: input, shape index: {}]
  %s5 = inlined_call_operand.hbm [shape: f32[16,16], index: 5, kind: output, shape index: {}]
  %s6 = sld [smem:[#allocation0]]
  $region30: #{time_series_encoder_forward.1} parent=0
    _
  %s8 = ssub.s32 1, %s6
  %s9 = scalar_select 0, %s8, %s6
  $region1: #{time_series_encoder_forward.1} parent=0
    #allocation2 [shape = 'u8[8192]{0}', space=vmem, size = 0x2000, scoped, tag = 'output window, operand 0, single buffered']
    #allocation3 [shape = 's32[1]{0}', space=sflag, size = 0x4, scoped, tag = 'scoped memory for time_series_encoder_forward.1']
    %10 = vsyncpa [#allocation3], 0
    // Predicated region
    $region2: #{time_series_encoder_forward.1} parent=1 // pred_check
      _
    $region3: #{time_series_encoder_forward.1} parent=1 // pred_check_branch
      %12 = sbr.rel (0) target = $region5
    $region4: #{time_series_encoder_forward.1} parent=1 // pred_region
      _
    $region5: #{time_series_encoder_forward.1} parent=1 // pred_fallthru
      _
    // Predicated region
    $region6: #{time_series_encoder_forward.1} parent=1 // pred_check
      _
    $region7: #{time_series_encoder_forward.1} parent=1 // pred_check_branch
      %14 = sbr.rel (0) target = $region9
    $region8: #{time_series_encoder_forward.1} parent=1 // pred_region
      _
    $region9: #{time_series_encoder_forward.1} parent=1 // pred_fallthru
      _
    // Predicated region
    $region10: #{time_series_encoder_forward.1} parent=1 // pred_check
      _
    $region11: #{time_series_encoder_forward.1} parent=1 // pred_check_branch
      %16 = sbr.rel (0) target = $region13
    $region12: #{time_series_encoder_forward.1} parent=1 // pred_region
      _
    $region13: #{time_series_encoder_forward.1} parent=1 // pred_fallthru
      _
    // Predicated region
    $region14: #{time_series_encoder_forward.1} parent=1 // pred_check
      _
    $region15: #{time_series_encoder_forward.1} parent=1 // pred_check_branch
      %18 = sbr.rel (0) target = $region17
    $region16: #{time_series_encoder_forward.1} parent=1 // pred_region
      _
    $region17: #{time_series_encoder_forward.1} parent=1 // pred_fallthru
      _
    // Predicated region
    $region18: #{time_series_encoder_forward.1} parent=1 // pred_check
      _
    $region19: #{time_series_encoder_forward.1} parent=1 // pred_check_branch
      %20 = sbr.rel (0) target = $region21
    $region20: #{time_series_encoder_forward.1} parent=1 // pred_region
      _
    $region21: #{time_series_encoder_forward.1} parent=1 // pred_fallthru
      _
    %v21 = vld [vmem:[%s0] sm:$0xff]
    %v22 = vld [vmem:[%s0 + $0x8] sm:$0xff]
    %v23 = vld [vmem:[%s1] sm:$0xf]
    %v24 = vld [vmem:[%s3] sm:$0x1]
    %v25 = vlaneseq
    %v26 = vshrl.u32 %v25, 7
    %v27 = vsub.s32 0, %v26
    %v28 = vrot.slane %v24, %v27
    %vm29 = vcmask 31744
    %v31 = vsel %vm29, %v21, 0
    %v34 = vsel %vm29, %v22, 0
    %vm36 = vcmask 1043456
    %v38 = vsel %vm36, %v23, 0
    %40 = vmatprep.subr.mxu0 0.0
    %41 = vmatpush1.msra.mxu0 %v38
    %42 = vmatprep.subr.mxu0 0.0
    %43 = vmatpush1.msra.mxu0 0.0
    %44 = vmatprep.subr.mxu0 0.0
    %45 = vmatpush1.msra.mxu0 0.0
    %46 = vmatprep.subr.mxu0 0.0
    %47 = vmatpush1.msra.mxu0 0.0
    %48 = vmatprep.subr.mxu0 0.0
    %49 = vmatpush1.msra.mxu0 0.0
    %50 = vmatprep.subr.mxu0 0.0
    %51 = vmatpush1.msra.mxu0 0.0
    %52 = vmatprep.subr.mxu0 0.0
    %53 = vmatpush1.msra.mxu0 0.0
    %54 = vmatprep.subr.mxu0 0.0
    %55 = vmatpush1.msra.mxu0 0.0
    %56 = vmatprep.subr.mxu0 0.0
    %57 = vmatpush1.msra.mxu0 0.0
    %58 = vmatprep.subr.mxu0 0.0
    %59 = vmatpush1.msra.mxu0 0.0
    %60 = vmatprep.subr.mxu0 0.0
    %61 = vmatpush1.msra.mxu0 0.0
    %62 = vmatprep.subr.mxu0 0.0
    %63 = vmatpush1.msra.mxu0 0.0
    %64 = vmatprep.subr.mxu0 0.0
    %65 = vmatpush1.msra.mxu0 0.0
    %66 = vmatprep.subr.mxu0 0.0
    %67 = vmatpush1.msra.mxu0 0.0
    %68 = vmatprep.subr.mxu0 0.0
    %69 = vmatpush1.msra.mxu0 0.0
    %70 = vmatprep.subr.mxu0 0.0
    %71 = vmatpush1.msra.mxu0 0.0
    %72 = vmatprep.subr.mxu0 0.0
    %73 = vmatpush1.msra.mxu0 0.0
    %74 = vmatprep.subr.mxu0 0.0
    %75 = vmatpush1.msra.mxu0 0.0
    %76 = vmatprep.subr.mxu0 0.0
    %77 = vmatpush1.msra.mxu0 0.0
    %78 = vmatprep.subr.mxu0 0.0
    %79 = vmatpush1.msra.mxu0 0.0
    %80 = vmatprep.subr.mxu0 0.0
    %81 = vmatpush1.msra.mxu0 0.0
    %82 = vmatprep.subr.mxu0 0.0
    %83 = vmatpush1.msra.mxu0 0.0
    %84 = vmatprep.subr.mxu0 0.0
    %85 = vmatpush1.msra.mxu0 0.0
    %86 = vmatprep.subr.mxu0 0.0
    %87 = vmatpush1.msra.mxu0 0.0
    %88 = vmatprep.subr.mxu0 0.0
    %89 = vmatpush1.msra.mxu0 0.0
    %90 = vmatprep.subr.mxu0 0.0
    %91 = vmatpush1.msra.mxu0 0.0
    %92 = vmatprep.subr.mxu0 0.0
    %93 = vmatpush1.msra.mxu0 0.0
    %94 = vmatprep.subr.mxu0 0.0
    %95 = vmatpush1.msra.mxu0 0.0
    %96 = vmatprep.subr.mxu0 0.0
    %97 = vmatpush1.msra.mxu0 0.0
    %98 = vmatprep.subr.mxu0 0.0
    %99 = vmatpush1.msra.mxu0 0.0
    %100 = vmatprep.subr.mxu0 0.0
    %101 = vmatpush1.msra.mxu0 0.0
    %102 = vmatprep.subr.mxu0 0.0
    %103 = vmatpush1.msra.mxu0 0.0
    %104 = vmatprep.mubr.f32.mxu0 0.0
    %105 = vmatmul.mubr.f32.gmra.mrb[0].mxu0 %v31
    %v106 = vpop.f32.mrb[0].mxu0
    %v107 = vadd.f32 %v28, %v106
    %v108 = vpop.f32.mrb[0].mxu0
    %109 = vmatprep.mubr.f32.mxu0 0.0
    %110 = vmatmul.mubr.f32.gmra.mrb[0].mxu0 %v34
    %v111 = vpop.f32.mrb[0].mxu0
    %v112 = vadd.f32 %v28, %v111
    %v113 = vpop.f32.mrb[0].mxu0
    %114 = vdwg.mxu0
    %v115 = vld [vmem:[%s2] sm:$0xff]
    %v116 = vld [vmem:[%s2 + $0x8] sm:$0xff]
    %v117 = vld [vmem:[%s2 + $0x10] sm:$0xff]
    %v118 = vld [vmem:[%s2 + $0x18] sm:$0xff]
    %v119 = vld [vmem:[%s3 + $0x1] sm:$0x1]
    %v120 = vlaneseq
    %v121 = vshrl.u32 %v120, 7
    %v122 = vsub.s32 0, %v121
    %v123 = vrot.slane %v119, %v122
    %v124 = vld [vmem:[%s3 + $0x2] sm:$0x1]
    %v125 = vlaneseq
    %v126 = vshrl.u32 %v125, 7
    %v127 = vsub.s32 0, %v126
    %v128 = vrot.slane %v124, %v127
    %vm129 = vcmask 261120
    %v131 = vsel %vm129, %v128, 0
    %133 = vmatprep.subr.mxu0 0.0
    %134 = vmatpush1.msra.mxu0 %v115
    %135 = vmatprep.subr.mxu0 0.0
    %136 = vmatpush1.msra.mxu0 %v116
    %137 = vmatprep.subr.mxu0 0.0
    %138 = vmatpush1.msra.mxu0 %v117
    %139 = vmatprep.subr.mxu0 0.0
    %140 = vmatpush1.msra.mxu0 %v118
    %141 = vmatprep.subr.mxu0 0.0
    %142 = vmatpush1.msra.mxu0 0.0
    %143 = vmatprep.subr.mxu0 0.0
    %144 = vmatpush1.msra.mxu0 0.0
    %145 = vmatprep.subr.mxu0 0.0
    %146 = vmatpush1.msra.mxu0 0.0
    %147 = vmatprep.subr.mxu0 0.0
    %148 = vmatpush1.msra.mxu0 0.0
    %149 = vmatprep.subr.mxu0 0.0
    %150 = vmatpush1.msra.mxu0 0.0
    %151 = vmatprep.subr.mxu0 0.0
    %152 = vmatpush1.msra.mxu0 0.0
    %153 = vmatprep.subr.mxu0 0.0
    %154 = vmatpush1.msra.mxu0 0.0
    %155 = vmatprep.subr.mxu0 0.0
    %156 = vmatpush1.msra.mxu0 0.0
    %157 = vmatprep.subr.mxu0 0.0
    %158 = vmatpush1.msra.mxu0 0.0
    %159 = vmatprep.subr.mxu0 0.0
    %160 = vmatpush1.msra.mxu0 0.0
    %161 = vmatprep.subr.mxu0 0.0
    %162 = vmatpush1.msra.mxu0 0.0
    %163 = vmatprep.subr.mxu0 0.0
    %164 = vmatpush1.msra.mxu0 0.0
    %165 = vmatprep.subr.mxu0 0.0
    %166 = vmatpush1.msra.mxu0 0.0
    %167 = vmatprep.subr.mxu0 0.0
    %168 = vmatpush1.msra.mxu0 0.0
    %169 = vmatprep.subr.mxu0 0.0
    %170 = vmatpush1.msra.mxu0 0.0
    %171 = vmatprep.subr.mxu0 0.0
    %172 = vmatpush1.msra.mxu0 0.0
    %173 = vmatprep.subr.mxu0 0.0
    %174 = vmatpush1.msra.mxu0 0.0
    %175 = vmatprep.subr.mxu0 0.0
    %176 = vmatpush1.msra.mxu0 0.0
    %177 = vmatprep.subr.mxu0 0.0
    %178 = vmatpush1.msra.mxu0 0.0
    %179 = vmatprep.subr.mxu0 0.0
    %180 = vmatpush1.msra.mxu0 0.0
    %181 = vmatprep.subr.mxu0 0.0
    %182 = vmatpush1.msra.mxu0 0.0
    %183 = vmatprep.subr.mxu0 0.0
    %184 = vmatpush1.msra.mxu0 0.0
    %185 = vmatprep.subr.mxu0 0.0
    %186 = vmatpush1.msra.mxu0 0.0
    %187 = vmatprep.subr.mxu0 0.0
    %188 = vmatpush1.msra.mxu0 0.0
    %189 = vmatprep.subr.mxu0 0.0
    %190 = vmatpush1.msra.mxu0 0.0
    %191 = vmatprep.subr.mxu0 0.0
    %192 = vmatpush1.msra.mxu0 0.0
    %193 = vmatprep.subr.mxu0 0.0
    %194 = vmatpush1.msra.mxu0 0.0
    %195 = vmatprep.subr.mxu0 0.0
    %196 = vmatpush1.msra.mxu0 0.0
    %197 = vmatprep.mubr.f32.mxu0 0.0
    %198 = vmatmul.mubr.f32.gmra.mrb[0].mxu0 %v131
    %v199 = vpop.f32.mrb[0].mxu0
    %v200 = vadd.f32 %v123, %v199
    %v201 = vpop.f32.mrb[0].mxu0
    %202 = vdwg.mxu0
    %v204 = vrot.slane %v200, 1
    %v207 = vadd.f32 %v107, %v200
    %v208 = vadd.f32 %v112, %v204
    %v209 = vxor.u32 %v207, 2147483648
    %v210 = vxor.u32 %v208, 2147483648
    %v211 = vmul.f32 %v209, 1.442695
    %v212 = vpow.pop %v211
    %v213 = vmul.f32 %v210, 1.442695
    %v214 = vpow.pop %v213
    %v215 = vadd.f32 %v212, 1.0
    %v216 = vadd.f32 %v214, 1.0
    %v217 = vrcp.pop %v215
    %v218 = vmul.f32 1.0, %v217
    %v219 = vrcp.pop %v216
    %v220 = vmul.f32 1.0, %v219
    %221 = vrot.lane.b32.xlu0 %v200, 64
    %v222 = vpop.permute.xlu0 %221
    %223 = vrot.lane.b32.xlu0 %v204, 64
    %v224 = vpop.permute.xlu0 %223
    %v227 = vmul.f32 %v218, %v222
    %v228 = vmul.f32 %v220, %v224
    %231 = vrot.lane.b32.xlu0 %v227, 64
    %v232 = vpop.permute.xlu0 %231
    %233 = vrot.lane.b32.xlu0 %v228, 64
    %v234 = vpop.permute.xlu0 %233
    %v237 = vadd.f32 %v107, %v232
    %v238 = vadd.f32 %v112, %v234
    %v239 = vtanh.pop %v237
    %v240 = vtanh.pop %v238
    %v243 = vrot.slane %v240, 7
    %vm244 = vcmask 1041409
    %v245 = vsel %vm244, %v243, %v239
    %246 = vrot.lane.b32.xlu0 %v245, 64
    %v247 = vpop.permute.xlu0 %246
    %v249 = vsub.f32 %v128, %v247
    %v251 = vrot.slane %v249, 1
    %252 = vrot.lane.b32.xlu0 %v249, 32
    %v253 = vpop.permute.xlu0 %252
    %254 = vrot.lane.b32.xlu0 %v251, 32
    %v255 = vpop.permute.xlu0 %254
    %v258 = vmul.f32 %v218, %v253
    %v259 = vmul.f32 %v220, %v255
    %262 = vrot.lane.b32.xlu0 %v258, 32
    %v263 = vpop.permute.xlu0 %262
    %264 = vrot.lane.b32.xlu0 %v259, 32
    %v265 = vpop.permute.xlu0 %264
    %v268 = vadd.f32 %v239, %v263
    %v269 = vadd.f32 %v240, %v265
    %v272 = vrot.slane %v269, 7
    %v273 = vsel %vm244, %v272, %v268
    %274 = vrot.lane.b32.xlu0 %v273, 64
    %v275 = vpop.permute.xlu0 %274
    %v276 = vsel %vm129, %v275, 0
    %278 = vmatprep.subr.mxu0 0.0
    %279 = vmatpush1.msra.mxu0 %v115
    %280 = vmatprep.subr.mxu0 0.0
    %281 = vmatpush1.msra.mxu0 %v116
    %282 = vmatprep.subr.mxu0 0.0
    %283 = vmatpush1.msra.mxu0 %v117
    %284 = vmatprep.subr.mxu0 0.0
    %285 = vmatpush1.msra.mxu0 %v118
    %286 = vmatprep.subr.mxu0 0.0
    %287 = vmatpush1.msra.mxu0 0.0
    %288 = vmatprep.subr.mxu0 0.0
    %289 = vmatpush1.msra.mxu0 0.0
    %290 = vmatprep.subr.mxu0 0.0
    %291 = vmatpush1.msra.mxu0 0.0
    %292 = vmatprep.subr.mxu0 0.0
    %293 = vmatpush1.msra.mxu0 0.0
    %294 = vmatprep.subr.mxu0 0.0
    %295 = vmatpush1.msra.mxu0 0.0
    %296 = vmatprep.subr.mxu0 0.0
    %297 = vmatpush1.msra.mxu0 0.0
    %298 = vmatprep.subr.mxu0 0.0
    %299 = vmatpush1.msra.mxu0 0.0
    %300 = vmatprep.subr.mxu0 0.0
    %301 = vmatpush1.msra.mxu0 0.0
    %302 = vmatprep.subr.mxu0 0.0
    %303 = vmatpush1.msra.mxu0 0.0
    %304 = vmatprep.subr.mxu0 0.0
    %305 = vmatpush1.msra.mxu0 0.0
    %306 = vmatprep.subr.mxu0 0.0
    %307 = vmatpush1.msra.mxu0 0.0
    %308 = vmatprep.subr.mxu0 0.0
    %309 = vmatpush1.msra.mxu0 0.0
    %310 = vmatprep.subr.mxu0 0.0
    %311 = vmatpush1.msra.mxu0 0.0
    %312 = vmatprep.subr.mxu0 0.0
    %313 = vmatpush1.msra.mxu0 0.0
    %314 = vmatprep.subr.mxu0 0.0
    %315 = vmatpush1.msra.mxu0 0.0
    %316 = vmatprep.subr.mxu0 0.0
    %317 = vmatpush1.msra.mxu0 0.0
    %318 = vmatprep.subr.mxu0 0.0
    %319 = vmatpush1.msra.mxu0 0.0
    %320 = vmatprep.subr.mxu0 0.0
    %321 = vmatpush1.msra.mxu0 0.0
    %322 = vmatprep.subr.mxu0 0.0
    %323 = vmatpush1.msra.mxu0 0.0
    %324 = vmatprep.subr.mxu0 0.0
    %325 = vmatpush1.msra.mxu0 0.0
    %326 = vmatprep.subr.mxu0 0.0
    %327 = vmatpush1.msra.mxu0 0.0
    %328 = vmatprep.subr.mxu0 0.0
    %329 = vmatpush1.msra.mxu0 0.0
    %330 = vmatprep.subr.mxu0 0.0
    %331 = vmatpush1.msra.mxu0 0.0
    %332 = vmatprep.subr.mxu0 0.0
    %333 = vmatpush1.msra.mxu0 0.0
    %334 = vmatprep.subr.mxu0 0.0
    %335 = vmatpush1.msra.mxu0 0.0
    %336 = vmatprep.subr.mxu0 0.0
    %337 = vmatpush1.msra.mxu0 0.0
    %338 = vmatprep.subr.mxu0 0.0
    %339 = vmatpush1.msra.mxu0 0.0
    %340 = vmatprep.subr.mxu0 0.0
    %341 = vmatpush1.msra.mxu0 0.0
    %342 = vmatprep.mubr.f32.mxu0 0.0
    %343 = vmatmul.mubr.f32.gmra.mrb[0].mxu0 %v276
    %v344 = vpop.f32.mrb[0].mxu0
    %v345 = vadd.f32 %v123, %v344
    %v346 = vpop.f32.mrb[0].mxu0
    %347 = vdwg.mxu0
    %v349 = vrot.slane %v345, 7
    %v352 = vadd.f32 %v107, %v349
    %v353 = vadd.f32 %v112, %v345
    %v354 = vxor.u32 %v352, 2147483648
    %v355 = vxor.u32 %v353, 2147483648
    %v356 = vmul.f32 %v354, 1.442695
    %v357 = vpow.pop %v356
    %v358 = vmul.f32 %v355, 1.442695
    %v359 = vpow.pop %v358
    %v360 = vadd.f32 %v357, 1.0
    %v361 = vadd.f32 %v359, 1.0
    %v362 = vrcp.pop %v360
    %v363 = vmul.f32 1.0, %v362
    %v364 = vrcp.pop %v361
    %v365 = vmul.f32 1.0, %v364
    %366 = vrot.lane.b32.xlu0 %v349, 64
    %v367 = vpop.permute.xlu0 %366
    %368 = vrot.lane.b32.xlu0 %v345, 64
    %v369 = vpop.permute.xlu0 %368
    %v372 = vmul.f32 %v363, %v367
    %v373 = vmul.f32 %v365, %v369
    %376 = vrot.lane.b32.xlu0 %v372, 64
    %v377 = vpop.permute.xlu0 %376
    %378 = vrot.lane.b32.xlu0 %v373, 64
    %v379 = vpop.permute.xlu0 %378
    %v382 = vadd.f32 %v107, %v377
    %v383 = vadd.f32 %v112, %v379
    %v384 = vtanh.pop %v382
    %v385 = vtanh.pop %v383
    %v388 = vrot.slane %v384, 1
    %v389 = vrot.slane %v385, 1
    %v392 = vsub.f32 %v268, %v388
    %v393 = vsub.f32 %v269, %v389
    %v396 = vrot.slane %v392, 7
    %v397 = vrot.slane %v393, 7
    %398 = vrot.lane.b32.xlu0 %v396, 96
    %v399 = vpop.permute.xlu0 %398
    %400 = vrot.lane.b32.xlu0 %v397, 96
    %v401 = vpop.permute.xlu0 %400
    %v404 = vmul.f32 %v363, %v399
    %v405 = vmul.f32 %v365, %v401
    %408 = vrot.lane.b32.xlu0 %v404, 32
    %v409 = vpop.permute.xlu0 %408
    %410 = vrot.lane.b32.xlu0 %v405, 32
    %v411 = vpop.permute.xlu0 %410
    %v414 = vadd.f32 %v384, %v409
    %v415 = vadd.f32 %v385, %v411
    %v418 = vrot.slane %v414, 1
    %v419 = vsel %vm244, %v415, %v418
    %420 = vrot.lane.b32.xlu0 %v419, 64
    %v421 = vpop.permute.xlu0 %420
    %v422 = vsel %vm129, %v421, 0
    %424 = vmatprep.subr.mxu0 0.0
    %425 = vmatpush1.msra.mxu0 %v115
    %426 = vmatprep.subr.mxu0 0.0
    %427 = vmatpush1.msra.mxu0 %v116
    %428 = vmatprep.subr.mxu0 0.0
    %429 = vmatpush1.msra.mxu0 %v117
    %430 = vmatprep.subr.mxu0 0.0
    %431 = vmatpush1.msra.mxu0 %v118
    %432 = vmatprep.subr.mxu0 0.0
    %433 = vmatpush1.msra.mxu0 0.0
    %434 = vmatprep.subr.mxu0 0.0
    %435 = vmatpush1.msra.mxu0 0.0
    %436 = vmatprep.subr.mxu0 0.0
    %437 = vmatpush1.msra.mxu0 0.0
    %438 = vmatprep.subr.mxu0 0.0
    %439 = vmatpush1.msra.mxu0 0.0
    %440 = vmatprep.subr.mxu0 0.0
    %441 = vmatpush1.msra.mxu0 0.0
    %442 = vmatprep.subr.mxu0 0.0
    %443 = vmatpush1.msra.mxu0 0.0
    %444 = vmatprep.subr.mxu0 0.0
    %445 = vmatpush1.msra.mxu0 0.0
    %446 = vmatprep.subr.mxu0 0.0
    %447 = vmatpush1.msra.mxu0 0.0
    %448 = vmatprep.subr.mxu0 0.0
    %449 = vmatpush1.msra.mxu0 0.0
    %450 = vmatprep.subr.mxu0 0.0
    %451 = vmatpush1.msra.mxu0 0.0
    %452 = vmatprep.subr.mxu0 0.0
    %453 = vmatpush1.msra.mxu0 0.0
    %454 = vmatprep.subr.mxu0 0.0
    %455 = vmatpush1.msra.mxu0 0.0
    %456 = vmatprep.subr.mxu0 0.0
    %457 = vmatpush1.msra.mxu0 0.0
    %458 = vmatprep.subr.mxu0 0.0
    %459 = vmatpush1.msra.mxu0 0.0
    %460 = vmatprep.subr.mxu0 0.0
    %461 = vmatpush1.msra.mxu0 0.0
    %462 = vmatprep.subr.mxu0 0.0
    %463 = vmatpush1.msra.mxu0 0.0
    %464 = vmatprep.subr.mxu0 0.0
    %465 = vmatpush1.msra.mxu0 0.0
    %466 = vmatprep.subr.mxu0 0.0
    %467 = vmatpush1.msra.mxu0 0.0
    %468 = vmatprep.subr.mxu0 0.0
    %469 = vmatpush1.msra.mxu0 0.0
    %470 = vmatprep.subr.mxu0 0.0
    %471 = vmatpush1.msra.mxu0 0.0
    %472 = vmatprep.subr.mxu0 0.0
    %473 = vmatpush1.msra.mxu0 0.0
    %474 = vmatprep.subr.mxu0 0.0
    %475 = vmatpush1.msra.mxu0 0.0
    %476 = vmatprep.subr.mxu0 0.0
    %477 = vmatpush1.msra.mxu0 0.0
    %478 = vmatprep.subr.mxu0 0.0
    %479 = vmatpush1.msra.mxu0 0.0
    %480 = vmatprep.subr.mxu0 0.0
    %481 = vmatpush1.msra.mxu0 0.0
    %482 = vmatprep.subr.mxu0 0.0
    %483 = vmatpush1.msra.mxu0 0.0
    %484 = vmatprep.subr.mxu0 0.0
    %485 = vmatpush1.msra.mxu0 0.0
    %486 = vmatprep.subr.mxu0 0.0
    %487 = vmatpush1.msra.mxu0 0.0
    %488 = vmatprep.mubr.f32.mxu0 0.0
    %489 = vmatmul.mubr.f32.gmra.mrb[0].mxu0 %v422
    %v490 = vpop.f32.mrb[0].mxu0
    %v491 = vadd.f32 %v123, %v490
    %v492 = vpop.f32.mrb[0].mxu0
    %493 = vdwg.mxu0
    %v495 = vrot.slane %v491, 6
    %v496 = vrot.slane %v491, 7
    %v499 = vadd.f32 %v107, %v495
    %v500 = vadd.f32 %v112, %v496
    %v501 = vxor.u32 %v499, 2147483648
    %v502 = vxor.u32 %v500, 2147483648
    %v503 = vmul.f32 %v501, 1.442695
    %v504 = vpow.pop %v503
    %v505 = vmul.f32 %v502, 1.442695
    %v506 = vpow.pop %v505
    %v507 = vadd.f32 %v504, 1.0
    %v508 = vadd.f32 %v506, 1.0
    %v509 = vrcp.pop %v507
    %v510 = vmul.f32 1.0, %v509
    %v511 = vrcp.pop %v508
    %v512 = vmul.f32 1.0, %v511
    %513 = vrot.lane.b32.xlu0 %v495, 64
    %v514 = vpop.permute.xlu0 %513
    %515 = vrot.lane.b32.xlu0 %v496, 64
    %v516 = vpop.permute.xlu0 %515
    %v519 = vmul.f32 %v510, %v514
    %v520 = vmul.f32 %v512, %v516
    %523 = vrot.lane.b32.xlu0 %v519, 64
    %v524 = vpop.permute.xlu0 %523
    %525 = vrot.lane.b32.xlu0 %v520, 64
    %v526 = vpop.permute.xlu0 %525
    %v529 = vadd.f32 %v107, %v524
    %v530 = vadd.f32 %v112, %v526
    %v531 = vtanh.pop %v529
    %v532 = vtanh.pop %v530
    %v535 = vrot.slane %v531, 1
    %v536 = vrot.slane %v532, 1
    %v539 = vsub.f32 %v414, %v535
    %v540 = vsub.f32 %v415, %v536
    %v543 = vrot.slane %v539, 7
    %v544 = vrot.slane %v540, 7
    %545 = vrot.lane.b32.xlu0 %v543, 96
    %v546 = vpop.permute.xlu0 %545
    %547 = vrot.lane.b32.xlu0 %v544, 96
    %v548 = vpop.permute.xlu0 %547
    %v551 = vmul.f32 %v510, %v546
    %v552 = vmul.f32 %v512, %v548
    %555 = vrot.lane.b32.xlu0 %v551, 32
    %v556 = vpop.permute.xlu0 %555
    %557 = vrot.lane.b32.xlu0 %v552, 32
    %v558 = vpop.permute.xlu0 %557
    %v561 = vadd.f32 %v531, %v556
    %v562 = vadd.f32 %v532, %v558
    %v565 = vrot.slane %v561, 2
    %v566 = vrot.slane %v562, 1
    %v567 = vsel %vm244, %v566, %v565
    %568 = vrot.lane.b32.xlu0 %v567, 64
    %v569 = vpop.permute.xlu0 %568
    %v570 = vsel %vm129, %v569, 0
    %572 = vmatprep.subr.mxu0 0.0
    %573 = vmatpush1.msra.mxu0 %v115
    %574 = vmatprep.subr.mxu0 0.0
    %575 = vmatpush1.msra.mxu0 %v116
    %576 = vmatprep.subr.mxu0 0.0
    %577 = vmatpush1.msra.mxu0 %v117
    %578 = vmatprep.subr.mxu0 0.0
    %579 = vmatpush1.msra.mxu0 %v118
    %580 = vmatprep.subr.mxu0 0.0
    %581 = vmatpush1.msra.mxu0 0.0
    %582 = vmatprep.subr.mxu0 0.0
    %583 = vmatpush1.msra.mxu0 0.0
    %584 = vmatprep.subr.mxu0 0.0
    %585 = vmatpush1.msra.mxu0 0.0
    %586 = vmatprep.subr.mxu0 0.0
    %587 = vmatpush1.msra.mxu0 0.0
    %588 = vmatprep.subr.mxu0 0.0
    %589 = vmatpush1.msra.mxu0 0.0
    %590 = vmatprep.subr.mxu0 0.0
    %591 = vmatpush1.msra.mxu0 0.0
    %592 = vmatprep.subr.mxu0 0.0
    %593 = vmatpush1.msra.mxu0 0.0
    %594 = vmatprep.subr.mxu0 0.0
    %595 = vmatpush1.msra.mxu0 0.0
    %596 = vmatprep.subr.mxu0 0.0
    %597 = vmatpush1.msra.mxu0 0.0
    %598 = vmatprep.subr.mxu0 0.0
    %599 = vmatpush1.msra.mxu0 0.0
    %600 = vmatprep.subr.mxu0 0.0
    %601 = vmatpush1.msra.mxu0 0.0
    %602 = vmatprep.subr.mxu0 0.0
    %603 = vmatpush1.msra.mxu0 0.0
    %604 = vmatprep.subr.mxu0 0.0
    %605 = vmatpush1.msra.mxu0 0.0
    %606 = vmatprep.subr.mxu0 0.0
    %607 = vmatpush1.msra.mxu0 0.0
    %608 = vmatprep.subr.mxu0 0.0
    %609 = vmatpush1.msra.mxu0 0.0
    %610 = vmatprep.subr.mxu0 0.0
    %611 = vmatpush1.msra.mxu0 0.0
    %612 = vmatprep.subr.mxu0 0.0
    %613 = vmatpush1.msra.mxu0 0.0
    %614 = vmatprep.subr.mxu0 0.0
    %615 = vmatpush1.msra.mxu0 0.0
    %616 = vmatprep.subr.mxu0 0.0
    %617 = vmatpush1.msra.mxu0 0.0
    %618 = vmatprep.subr.mxu0 0.0
    %619 = vmatpush1.msra.mxu0 0.0
    %620 = vmatprep.subr.mxu0 0.0
    %621 = vmatpush1.msra.mxu0 0.0
    %622 = vmatprep.subr.mxu0 0.0
    %623 = vmatpush1.msra.mxu0 0.0
    %624 = vmatprep.subr.mxu0 0.0
    %625 = vmatpush1.msra.mxu0 0.0
    %626 = vmatprep.subr.mxu0 0.0
    %627 = vmatpush1.msra.mxu0 0.0
    %628 = vmatprep.subr.mxu0 0.0
    %629 = vmatpush1.msra.mxu0 0.0
    %630 = vmatprep.subr.mxu0 0.0
    %631 = vmatpush1.msra.mxu0 0.0
    %632 = vmatprep.subr.mxu0 0.0
    %633 = vmatpush1.msra.mxu0 0.0
    %634 = vmatprep.subr.mxu0 0.0
    %635 = vmatpush1.msra.mxu0 0.0
    %636 = vmatprep.mubr.f32.mxu0 0.0
    %637 = vmatmul.mubr.f32.gmra.mrb[0].mxu0 %v570
    %v638 = vpop.f32.mrb[0].mxu0
    %v639 = vadd.f32 %v123, %v638
    %v640 = vpop.f32.mrb[0].mxu0
    %641 = vdwg.mxu0
    %v643 = vrot.slane %v639, 5
    %v644 = vrot.slane %v639, 6
    %v647 = vadd.f32 %v107, %v643
    %v648 = vadd.f32 %v112, %v644
    %v649 = vxor.u32 %v647, 2147483648
    %v650 = vxor.u32 %v648, 2147483648
    %v651 = vmul.f32 %v649, 1.442695
    %v652 = vpow.pop %v651
    %v653 = vmul.f32 %v650, 1.442695
    %v654 = vpow.pop %v653
    %v655 = vadd.f32 %v652, 1.0
    %v656 = vadd.f32 %v654, 1.0
    %v657 = vrcp.pop %v655
    %v658 = vmul.f32 1.0, %v657
    %v659 = vrcp.pop %v656
    %v660 = vmul.f32 1.0, %v659
    %661 = vrot.lane.b32.xlu0 %v643, 64
    %v662 = vpop.permute.xlu0 %661
    %663 = vrot.lane.b32.xlu0 %v644, 64
    %v664 = vpop.permute.xlu0 %663
    %v667 = vmul.f32 %v658, %v662
    %v668 = vmul.f32 %v660, %v664
    %671 = vrot.lane.b32.xlu0 %v667, 64
    %v672 = vpop.permute.xlu0 %671
    %673 = vrot.lane.b32.xlu0 %v668, 64
    %v674 = vpop.permute.xlu0 %673
    %v677 = vadd.f32 %v107, %v672
    %v678 = vadd.f32 %v112, %v674
    %v679 = vtanh.pop %v677
    %v680 = vtanh.pop %v678
    %v683 = vrot.slane %v679, 1
    %v684 = vrot.slane %v680, 1
    %v687 = vsub.f32 %v561, %v683
    %v688 = vsub.f32 %v562, %v684
    %v691 = vrot.slane %v687, 7
    %v692 = vrot.slane %v688, 7
    %693 = vrot.lane.b32.xlu0 %v691, 96
    %v694 = vpop.permute.xlu0 %693
    %695 = vrot.lane.b32.xlu0 %v692, 96
    %v696 = vpop.permute.xlu0 %695
    %v699 = vmul.f32 %v658, %v694
    %v700 = vmul.f32 %v660, %v696
    %703 = vrot.lane.b32.xlu0 %v699, 32
    %v704 = vpop.permute.xlu0 %703
    %705 = vrot.lane.b32.xlu0 %v700, 32
    %v706 = vpop.permute.xlu0 %705
    %v709 = vadd.f32 %v679, %v704
    %v710 = vadd.f32 %v680, %v706
    %v713 = vrot.slane %v709, 3
    %v714 = vrot.slane %v710, 2
    %v715 = vsel %vm244, %v714, %v713
    %716 = vrot.lane.b32.xlu0 %v715, 64
    %v717 = vpop.permute.xlu0 %716
    %v718 = vsel %vm129, %v717, 0
    %720 = vmatprep.subr.mxu0 0.0
    %721 = vmatpush1.msra.mxu0 %v115
    %722 = vmatprep.subr.mxu0 0.0
    %723 = vmatpush1.msra.mxu0 %v116
    %724 = vmatprep.subr.mxu0 0.0
    %725 = vmatpush1.msra.mxu0 %v117
    %726 = vmatprep.subr.mxu0 0.0
    %727 = vmatpush1.msra.mxu0 %v118
    %728 = vmatprep.subr.mxu0 0.0
    %729 = vmatpush1.msra.mxu0 0.0
    %730 = vmatprep.subr.mxu0 0.0
    %731 = vmatpush1.msra.mxu0 0.0
    %732 = vmatprep.subr.mxu0 0.0
    %733 = vmatpush1.msra.mxu0 0.0
    %734 = vmatprep.subr.mxu0 0.0
    %735 = vmatpush1.msra.mxu0 0.0
    %736 = vmatprep.subr.mxu0 0.0
    %737 = vmatpush1.msra.mxu0 0.0
    %738 = vmatprep.subr.mxu0 0.0
    %739 = vmatpush1.msra.mxu0 0.0
    %740 = vmatprep.subr.mxu0 0.0
    %741 = vmatpush1.msra.mxu0 0.0
    %742 = vmatprep.subr.mxu0 0.0
    %743 = vmatpush1.msra.mxu0 0.0
    %744 = vmatprep.subr.mxu0 0.0
    %745 = vmatpush1.msra.mxu0 0.0
    %746 = vmatprep.subr.mxu0 0.0
    %747 = vmatpush1.msra.mxu0 0.0
    %748 = vmatprep.subr.mxu0 0.0
    %749 = vmatpush1.msra.mxu0 0.0
    %750 = vmatprep.subr.mxu0 0.0
    %751 = vmatpush1.msra.mxu0 0.0
    %752 = vmatprep.subr.mxu0 0.0
    %753 = vmatpush1.msra.mxu0 0.0
    %754 = vmatprep.subr.mxu0 0.0
    %755 = vmatpush1.msra.mxu0 0.0
    %756 = vmatprep.subr.mxu0 0.0
    %757 = vmatpush1.msra.mxu0 0.0
    %758 = vmatprep.subr.mxu0 0.0
    %759 = vmatpush1.msra.mxu0 0.0
    %760 = vmatprep.subr.mxu0 0.0
    %761 = vmatpush1.msra.mxu0 0.0
    %762 = vmatprep.subr.mxu0 0.0
    %763 = vmatpush1.msra.mxu0 0.0
    %764 = vmatprep.subr.mxu0 0.0
    %765 = vmatpush1.msra.mxu0 0.0
    %766 = vmatprep.subr.mxu0 0.0
    %767 = vmatpush1.msra.mxu0 0.0
    %768 = vmatprep.subr.mxu0 0.0
    %769 = vmatpush1.msra.mxu0 0.0
    %770 = vmatprep.subr.mxu0 0.0
    %771 = vmatpush1.msra.mxu0 0.0
    %772 = vmatprep.subr.mxu0 0.0
    %773 = vmatpush1.msra.mxu0 0.0
    %774 = vmatprep.subr.mxu0 0.0
    %775 = vmatpush1.msra.mxu0 0.0
    %776 = vmatprep.subr.mxu0 0.0
    %777 = vmatpush1.msra.mxu0 0.0
    %778 = vmatprep.subr.mxu0 0.0
    %779 = vmatpush1.msra.mxu0 0.0
    %780 = vmatprep.subr.mxu0 0.0
    %781 = vmatpush1.msra.mxu0 0.0
    %782 = vmatprep.subr.mxu0 0.0
    %783 = vmatpush1.msra.mxu0 0.0
    %784 = vmatprep.mubr.f32.mxu0 0.0
    %785 = vmatmul.mubr.f32.gmra.mrb[0].mxu0 %v718
    %v786 = vpop.f32.mrb[0].mxu0
    %v787 = vadd.f32 %v123, %v786
    %v788 = vpop.f32.mrb[0].mxu0
    %789 = vdwg.mxu0
    %v791 = vrot.slane %v787, 4
    %v792 = vrot.slane %v787, 5
    %v795 = vadd.f32 %v107, %v791
    %v796 = vadd.f32 %v112, %v792
    %v797 = vxor.u32 %v795, 2147483648
    %v798 = vxor.u32 %v796, 2147483648
    %v799 = vmul.f32 %v797, 1.442695
    %v800 = vpow.pop %v799
    %v801 = vmul.f32 %v798, 1.442695
    %v802 = vpow.pop %v801
    %v803 = vadd.f32 %v800, 1.0
    %v804 = vadd.f32 %v802, 1.0
    %v805 = vrcp.pop %v803
    %v806 = vmul.f32 1.0, %v805
    %v807 = vrcp.pop %v804
    %v808 = vmul.f32 1.0, %v807
    %809 = vrot.lane.b32.xlu0 %v791, 64
    %v810 = vpop.permute.xlu0 %809
    %811 = vrot.lane.b32.xlu0 %v792, 64
    %v812 = vpop.permute.xlu0 %811
    %v815 = vmul.f32 %v806, %v810
    %v816 = vmul.f32 %v808, %v812
    %819 = vrot.lane.b32.xlu0 %v815, 64
    %v820 = vpop.permute.xlu0 %819
    %821 = vrot.lane.b32.xlu0 %v816, 64
    %v822 = vpop.permute.xlu0 %821
    %v825 = vadd.f32 %v107, %v820
    %v826 = vadd.f32 %v112, %v822
    %v827 = vtanh.pop %v825
    %v828 = vtanh.pop %v826
    %v831 = vrot.slane %v827, 1
    %v832 = vrot.slane %v828, 1
    %v835 = vsub.f32 %v709, %v831
    %v836 = vsub.f32 %v710, %v832
    %v839 = vrot.slane %v835, 7
    %v840 = vrot.slane %v836, 7
    %841 = vrot.lane.b32.xlu0 %v839, 96
    %v842 = vpop.permute.xlu0 %841
    %843 = vrot.lane.b32.xlu0 %v840, 96
    %v844 = vpop.permute.xlu0 %843
    %v847 = vmul.f32 %v806, %v842
    %v848 = vmul.f32 %v808, %v844
    %851 = vrot.lane.b32.xlu0 %v847, 32
    %v852 = vpop.permute.xlu0 %851
    %853 = vrot.lane.b32.xlu0 %v848, 32
    %v854 = vpop.permute.xlu0 %853
    %v857 = vadd.f32 %v827, %v852
    %v858 = vadd.f32 %v828, %v854
    %v861 = vrot.slane %v857, 4
    %v862 = vrot.slane %v858, 3
    %v863 = vsel %vm244, %v862, %v861
    %864 = vrot.lane.b32.xlu0 %v863, 64
    %v865 = vpop.permute.xlu0 %864
    %v866 = vsel %vm129, %v865, 0
    %868 = vmatprep.subr.mxu0 0.0
    %869 = vmatpush1.msra.mxu0 %v115
    %870 = vmatprep.subr.mxu0 0.0
    %871 = vmatpush1.msra.mxu0 %v116
    %872 = vmatprep.subr.mxu0 0.0
    %873 = vmatpush1.msra.mxu0 %v117
    %874 = vmatprep.subr.mxu0 0.0
    %875 = vmatpush1.msra.mxu0 %v118
    %876 = vmatprep.subr.mxu0 0.0
    %877 = vmatpush1.msra.mxu0 0.0
    %878 = vmatprep.subr.mxu0 0.0
    %879 = vmatpush1.msra.mxu0 0.0
    %880 = vmatprep.subr.mxu0 0.0
    %881 = vmatpush1.msra.mxu0 0.0
    %882 = vmatprep.subr.mxu0 0.0
    %883 = vmatpush1.msra.mxu0 0.0
    %884 = vmatprep.subr.mxu0 0.0
    %885 = vmatpush1.msra.mxu0 0.0
    %886 = vmatprep.subr.mxu0 0.0
    %887 = vmatpush1.msra.mxu0 0.0
    %888 = vmatprep.subr.mxu0 0.0
    %889 = vmatpush1.msra.mxu0 0.0
    %890 = vmatprep.subr.mxu0 0.0
    %891 = vmatpush1.msra.mxu0 0.0
    %892 = vmatprep.subr.mxu0 0.0
    %893 = vmatpush1.msra.mxu0 0.0
    %894 = vmatprep.subr.mxu0 0.0
    %895 = vmatpush1.msra.mxu0 0.0
    %896 = vmatprep.subr.mxu0 0.0
    %897 = vmatpush1.msra.mxu0 0.0
    %898 = vmatprep.subr.mxu0 0.0
    %899 = vmatpush1.msra.mxu0 0.0
    %900 = vmatprep.subr.mxu0 0.0
    %901 = vmatpush1.msra.mxu0 0.0
    %902 = vmatprep.subr.mxu0 0.0
    %903 = vmatpush1.msra.mxu0 0.0
    %904 = vmatprep.subr.mxu0 0.0
    %905 = vmatpush1.msra.mxu0 0.0
    %906 = vmatprep.subr.mxu0 0.0
    %907 = vmatpush1.msra.mxu0 0.0
    %908 = vmatprep.subr.mxu0 0.0
    %909 = vmatpush1.msra.mxu0 0.0
    %910 = vmatprep.subr.mxu0 0.0
    %911 = vmatpush1.msra.mxu0 0.0
    %912 = vmatprep.subr.mxu0 0.0
    %913 = vmatpush1.msra.mxu0 0.0
    %914 = vmatprep.subr.mxu0 0.0
    %915 = vmatpush1.msra.mxu0 0.0
    %916 = vmatprep.subr.mxu0 0.0
    %917 = vmatpush1.msra.mxu0 0.0
    %918 = vmatprep.subr.mxu0 0.0
    %919 = vmatpush1.msra.mxu0 0.0
    %920 = vmatprep.subr.mxu0 0.0
    %921 = vmatpush1.msra.mxu0 0.0
    %922 = vmatprep.subr.mxu0 0.0
    %923 = vmatpush1.msra.mxu0 0.0
    %924 = vmatprep.subr.mxu0 0.0
    %925 = vmatpush1.msra.mxu0 0.0
    %926 = vmatprep.subr.mxu0 0.0
    %927 = vmatpush1.msra.mxu0 0.0
    %928 = vmatprep.subr.mxu0 0.0
    %929 = vmatpush1.msra.mxu0 0.0
    %930 = vmatprep.subr.mxu0 0.0
    %931 = vmatpush1.msra.mxu0 0.0
    %932 = vmatprep.mubr.f32.mxu0 0.0
    %933 = vmatmul.mubr.f32.gmra.mrb[0].mxu0 %v866
    %v934 = vpop.f32.mrb[0].mxu0
    %v935 = vadd.f32 %v123, %v934
    %v936 = vpop.f32.mrb[0].mxu0
    %937 = vdwg.mxu0
    %v939 = vrot.slane %v935, 3
    %v940 = vrot.slane %v935, 4
    %v943 = vadd.f32 %v107, %v939
    %v944 = vadd.f32 %v112, %v940
    %v945 = vxor.u32 %v943, 2147483648
    %v946 = vxor.u32 %v944, 2147483648
    %v947 = vmul.f32 %v945, 1.442695
    %v948 = vpow.pop %v947
    %v949 = vmul.f32 %v946, 1.442695
    %v950 = vpow.pop %v949
    %v951 = vadd.f32 %v948, 1.0
    %v952 = vadd.f32 %v950, 1.0
    %v953 = vrcp.pop %v951
    %v954 = vmul.f32 1.0, %v953
    %v955 = vrcp.pop %v952
    %v956 = vmul.f32 1.0, %v955
    %957 = vrot.lane.b32.xlu0 %v939, 64
    %v958 = vpop.permute.xlu0 %957
    %959 = vrot.lane.b32.xlu0 %v940, 64
    %v960 = vpop.permute.xlu0 %959
    %v963 = vmul.f32 %v954, %v958
    %v964 = vmul.f32 %v956, %v960
    %967 = vrot.lane.b32.xlu0 %v963, 64
    %v968 = vpop.permute.xlu0 %967
    %969 = vrot.lane.b32.xlu0 %v964, 64
    %v970 = vpop.permute.xlu0 %969
    %v973 = vadd.f32 %v107, %v968
    %v974 = vadd.f32 %v112, %v970
    %v975 = vtanh.pop %v973
    %v976 = vtanh.pop %v974
    %v979 = vrot.slane %v975, 1
    %v980 = vrot.slane %v976, 1
    %v983 = vsub.f32 %v857, %v979
    %v984 = vsub.f32 %v858, %v980
    %v987 = vrot.slane %v983, 7
    %v988 = vrot.slane %v984, 7
    %989 = vrot.lane.b32.xlu0 %v987, 96
    %v990 = vpop.permute.xlu0 %989
    %991 = vrot.lane.b32.xlu0 %v988, 96
    %v992 = vpop.permute.xlu0 %991
    %v995 = vmul.f32 %v954, %v990
    %v996 = vmul.f32 %v956, %v992
    %999 = vrot.lane.b32.xlu0 %v995, 32
    %v1000 = vpop.permute.xlu0 %999
    %1001 = vrot.lane.b32.xlu0 %v996, 32
    %v1002 = vpop.permute.xlu0 %1001
    %v1005 = vadd.f32 %v975, %v1000
    %v1006 = vadd.f32 %v976, %v1002
    %v1009 = vrot.slane %v1005, 5
    %v1010 = vrot.slane %v1006, 4
    %v1011 = vsel %vm244, %v1010, %v1009
    %1012 = vrot.lane.b32.xlu0 %v1011, 64
    %v1013 = vpop.permute.xlu0 %1012
    %v1014 = vsel %vm129, %v1013, 0
    %1016 = vmatprep.subr.mxu0 0.0
    %1017 = vmatpush1.msra.mxu0 %v115
    %1018 = vmatprep.subr.mxu0 0.0
    %1019 = vmatpush1.msra.mxu0 %v116
    %1020 = vmatprep.subr.mxu0 0.0
    %1021 = vmatpush1.msra.mxu0 %v117
    %1022 = vmatprep.subr.mxu0 0.0
    %1023 = vmatpush1.msra.mxu0 %v118
    %1024 = vmatprep.subr.mxu0 0.0
    %1025 = vmatpush1.msra.mxu0 0.0
    %1026 = vmatprep.subr.mxu0 0.0
    %1027 = vmatpush1.msra.mxu0 0.0
    %1028 = vmatprep.subr.mxu0 0.0
    %1029 = vmatpush1.msra.mxu0 0.0
    %1030 = vmatprep.subr.mxu0 0.0
    %1031 = vmatpush1.msra.mxu0 0.0
    %1032 = vmatprep.subr.mxu0 0.0
    %1033 = vmatpush1.msra.mxu0 0.0
    %1034 = vmatprep.subr.mxu0 0.0
    %1035 = vmatpush1.msra.mxu0 0.0
    %1036 = vmatprep.subr.mxu0 0.0
    %1037 = vmatpush1.msra.mxu0 0.0
    %1038 = vmatprep.subr.mxu0 0.0
    %1039 = vmatpush1.msra.mxu0 0.0
    %1040 = vmatprep.subr.mxu0 0.0
    %1041 = vmatpush1.msra.mxu0 0.0
    %1042 = vmatprep.subr.mxu0 0.0
    %1043 = vmatpush1.msra.mxu0 0.0
    %1044 = vmatprep.subr.mxu0 0.0
    %1045 = vmatpush1.msra.mxu0 0.0
    %1046 = vmatprep.subr.mxu0 0.0
    %1047 = vmatpush1.msra.mxu0 0.0
    %1048 = vmatprep.subr.mxu0 0.0
    %1049 = vmatpush1.msra.mxu0 0.0
    %1050 = vmatprep.subr.mxu0 0.0
    %1051 = vmatpush1.msra.mxu0 0.0
    %1052 = vmatprep.subr.mxu0 0.0
    %1053 = vmatpush1.msra.mxu0 0.0
    %1054 = vmatprep.subr.mxu0 0.0
    %1055 = vmatpush1.msra.mxu0 0.0
    %1056 = vmatprep.subr.mxu0 0.0
    %1057 = vmatpush1.msra.mxu0 0.0
    %1058 = vmatprep.subr.mxu0 0.0
    %1059 = vmatpush1.msra.mxu0 0.0
    %1060 = vmatprep.subr.mxu0 0.0
    %1061 = vmatpush1.msra.mxu0 0.0
    %1062 = vmatprep.subr.mxu0 0.0
    %1063 = vmatpush1.msra.mxu0 0.0
    %1064 = vmatprep.subr.mxu0 0.0
    %1065 = vmatpush1.msra.mxu0 0.0
    %1066 = vmatprep.subr.mxu0 0.0
    %1067 = vmatpush1.msra.mxu0 0.0
    %1068 = vmatprep.subr.mxu0 0.0
    %1069 = vmatpush1.msra.mxu0 0.0
    %1070 = vmatprep.subr.mxu0 0.0
    %1071 = vmatpush1.msra.mxu0 0.0
    %1072 = vmatprep.subr.mxu0 0.0
    %1073 = vmatpush1.msra.mxu0 0.0
    %1074 = vmatprep.subr.mxu0 0.0
    %1075 = vmatpush1.msra.mxu0 0.0
    %1076 = vmatprep.subr.mxu0 0.0
    %1077 = vmatpush1.msra.mxu0 0.0
    %1078 = vmatprep.subr.mxu0 0.0
    %1079 = vmatpush1.msra.mxu0 0.0
    %1080 = vmatprep.mubr.f32.mxu0 0.0
    %1081 = vmatmul.mubr.f32.gmra.mrb[0].mxu0 %v1014
    %v1082 = vpop.f32.mrb[0].mxu0
    %v1083 = vadd.f32 %v123, %v1082
    %v1084 = vpop.f32.mrb[0].mxu0
    %1085 = vdwg.mxu0
    %v1087 = vrot.slane %v1083, 2
    %v1088 = vrot.slane %v1083, 3
    %v1091 = vadd.f32 %v107, %v1087
    %v1092 = vadd.f32 %v112, %v1088
    %v1093 = vxor.u32 %v1091, 2147483648
    %v1094 = vxor.u32 %v1092, 2147483648
    %v1095 = vmul.f32 %v1093, 1.442695
    %v1096 = vpow.pop %v1095
    %v1097 = vmul.f32 %v1094, 1.442695
    %v1098 = vpow.pop %v1097
    %v1099 = vadd.f32 %v1096, 1.0
    %v1100 = vadd.f32 %v1098, 1.0
    %v1101 = vrcp.pop %v1099
    %v1102 = vmul.f32 1.0, %v1101
    %v1103 = vrcp.pop %v1100
    %v1104 = vmul.f32 1.0, %v1103
    %1105 = vrot.lane.b32.xlu0 %v1087, 64
    %v1106 = vpop.permute.xlu0 %1105
    %1107 = vrot.lane.b32.xlu0 %v1088, 64
    %v1108 = vpop.permute.xlu0 %1107
    %v1111 = vmul.f32 %v1102, %v1106
    %v1112 = vmul.f32 %v1104, %v1108
    %1115 = vrot.lane.b32.xlu0 %v1111, 64
    %v1116 = vpop.permute.xlu0 %1115
    %1117 = vrot.lane.b32.xlu0 %v1112, 64
    %v1118 = vpop.permute.xlu0 %1117
    %v1121 = vadd.f32 %v107, %v1116
    %v1122 = vadd.f32 %v112, %v1118
    %v1123 = vtanh.pop %v1121
    %v1124 = vtanh.pop %v1122
    %v1127 = vrot.slane %v1123, 1
    %v1128 = vrot.slane %v1124, 1
    %v1131 = vsub.f32 %v1005, %v1127
    %v1132 = vsub.f32 %v1006, %v1128
    %v1135 = vrot.slane %v1131, 7
    %v1136 = vrot.slane %v1132, 7
    %1137 = vrot.lane.b32.xlu0 %v1135, 96
    %v1138 = vpop.permute.xlu0 %1137
    %1139 = vrot.lane.b32.xlu0 %v1136, 96
    %v1140 = vpop.permute.xlu0 %1139
    %v1143 = vmul.f32 %v1102, %v1138
    %v1144 = vmul.f32 %v1104, %v1140
    %1147 = vrot.lane.b32.xlu0 %v1143, 32
    %v1148 = vpop.permute.xlu0 %1147
    %1149 = vrot.lane.b32.xlu0 %v1144, 32
    %v1150 = vpop.permute.xlu0 %1149
    %v1153 = vadd.f32 %v1123, %v1148
    %v1154 = vadd.f32 %v1124, %v1150
    %v1157 = vrot.slane %v1153, 6
    %v1158 = vrot.slane %v1154, 5
    %v1159 = vsel %vm244, %v1158, %v1157
    %1160 = vrot.lane.b32.xlu0 %v1159, 64
    %v1161 = vpop.permute.xlu0 %1160
    %v1162 = vsel %vm129, %v1161, 0
    %1164 = vmatprep.subr.mxu0 0.0
    %1165 = vmatpush1.msra.mxu0 %v115
    %1166 = vmatprep.subr.mxu0 0.0
    %1167 = vmatpush1.msra.mxu0 %v116
    %1168 = vmatprep.subr.mxu0 0.0
    %1169 = vmatpush1.msra.mxu0 %v117
    %1170 = vmatprep.subr.mxu0 0.0
    %1171 = vmatpush1.msra.mxu0 %v118
    %1172 = vmatprep.subr.mxu0 0.0
    %1173 = vmatpush1.msra.mxu0 0.0
    %1174 = vmatprep.subr.mxu0 0.0
    %1175 = vmatpush1.msra.mxu0 0.0
    %1176 = vmatprep.subr.mxu0 0.0
    %1177 = vmatpush1.msra.mxu0 0.0
    %1178 = vmatprep.subr.mxu0 0.0
    %1179 = vmatpush1.msra.mxu0 0.0
    %1180 = vmatprep.subr.mxu0 0.0
    %1181 = vmatpush1.msra.mxu0 0.0
    %1182 = vmatprep.subr.mxu0 0.0
    %1183 = vmatpush1.msra.mxu0 0.0
    %1184 = vmatprep.subr.mxu0 0.0
    %1185 = vmatpush1.msra.mxu0 0.0
    %1186 = vmatprep.subr.mxu0 0.0
    %1187 = vmatpush1.msra.mxu0 0.0
    %1188 = vmatprep.subr.mxu0 0.0
    %1189 = vmatpush1.msra.mxu0 0.0
    %1190 = vmatprep.subr.mxu0 0.0
    %1191 = vmatpush1.msra.mxu0 0.0
    %1192 = vmatprep.subr.mxu0 0.0
    %1193 = vmatpush1.msra.mxu0 0.0
    %1194 = vmatprep.subr.mxu0 0.0
    %1195 = vmatpush1.msra.mxu0 0.0
    %1196 = vmatprep.subr.mxu0 0.0
    %1197 = vmatpush1.msra.mxu0 0.0
    %1198 = vmatprep.subr.mxu0 0.0
    %1199 = vmatpush1.msra.mxu0 0.0
    %1200 = vmatprep.subr.mxu0 0.0
    %1201 = vmatpush1.msra.mxu0 0.0
    %1202 = vmatprep.subr.mxu0 0.0
    %1203 = vmatpush1.msra.mxu0 0.0
    %1204 = vmatprep.subr.mxu0 0.0
    %1205 = vmatpush1.msra.mxu0 0.0
    %1206 = vmatprep.subr.mxu0 0.0
    %1207 = vmatpush1.msra.mxu0 0.0
    %1208 = vmatprep.subr.mxu0 0.0
    %1209 = vmatpush1.msra.mxu0 0.0
    %1210 = vmatprep.subr.mxu0 0.0
    %1211 = vmatpush1.msra.mxu0 0.0
    %1212 = vmatprep.subr.mxu0 0.0
    %1213 = vmatpush1.msra.mxu0 0.0
    %1214 = vmatprep.subr.mxu0 0.0
    %1215 = vmatpush1.msra.mxu0 0.0
    %1216 = vmatprep.subr.mxu0 0.0
    %1217 = vmatpush1.msra.mxu0 0.0
    %1218 = vmatprep.subr.mxu0 0.0
    %1219 = vmatpush1.msra.mxu0 0.0
    %1220 = vmatprep.subr.mxu0 0.0
    %1221 = vmatpush1.msra.mxu0 0.0
    %1222 = vmatprep.subr.mxu0 0.0
    %1223 = vmatpush1.msra.mxu0 0.0
    %1224 = vmatprep.subr.mxu0 0.0
    %1225 = vmatpush1.msra.mxu0 0.0
    %1226 = vmatprep.subr.mxu0 0.0
    %1227 = vmatpush1.msra.mxu0 0.0
    %1228 = vmatprep.mubr.f32.mxu0 0.0
    %1229 = vmatmul.mubr.f32.gmra.mrb[0].mxu0 %v1162
    %v1230 = vpop.f32.mrb[0].mxu0
    %v1231 = vadd.f32 %v123, %v1230
    %v1232 = vpop.f32.mrb[0].mxu0
    %1233 = vdwg.mxu0
    %v1235 = vrot.slane %v1231, 1
    %v1236 = vrot.slane %v1231, 2
    %v1239 = vadd.f32 %v107, %v1235
    %v1240 = vadd.f32 %v112, %v1236
    %v1241 = vxor.u32 %v1239, 2147483648
    %v1242 = vxor.u32 %v1240, 2147483648
    %v1243 = vmul.f32 %v1241, 1.442695
    %v1244 = vpow.pop %v1243
    %v1245 = vmul.f32 %v1242, 1.442695
    %v1246 = vpow.pop %v1245
    %v1247 = vadd.f32 %v1244, 1.0
    %v1248 = vadd.f32 %v1246, 1.0
    %v1249 = vrcp.pop %v1247
    %v1250 = vmul.f32 1.0, %v1249
    %v1251 = vrcp.pop %v1248
    %v1252 = vmul.f32 1.0, %v1251
    %1253 = vrot.lane.b32.xlu0 %v1235, 64
    %v1254 = vpop.permute.xlu0 %1253
    %1255 = vrot.lane.b32.xlu0 %v1236, 64
    %v1256 = vpop.permute.xlu0 %1255
    %v1259 = vmul.f32 %v1250, %v1254
    %v1260 = vmul.f32 %v1252, %v1256
    %1263 = vrot.lane.b32.xlu0 %v1259, 64
    %v1264 = vpop.permute.xlu0 %1263
    %1265 = vrot.lane.b32.xlu0 %v1260, 64
    %v1266 = vpop.permute.xlu0 %1265
    %v1269 = vadd.f32 %v107, %v1264
    %v1270 = vadd.f32 %v112, %v1266
    %v1271 = vtanh.pop %v1269
    %v1272 = vtanh.pop %v1270
    %v1275 = vrot.slane %v1271, 1
    %v1276 = vrot.slane %v1272, 1
    %v1279 = vsub.f32 %v1153, %v1275
    %v1280 = vsub.f32 %v1154, %v1276
    %v1283 = vrot.slane %v1279, 7
    %v1284 = vrot.slane %v1280, 7
    %1285 = vrot.lane.b32.xlu0 %v1283, 96
    %v1286 = vpop.permute.xlu0 %1285
    %1287 = vrot.lane.b32.xlu0 %v1284, 96
    %v1288 = vpop.permute.xlu0 %1287
    %v1291 = vmul.f32 %v1250, %v1286
    %v1292 = vmul.f32 %v1252, %v1288
    %1295 = vrot.lane.b32.xlu0 %v1291, 32
    %v1296 = vpop.permute.xlu0 %1295
    %1297 = vrot.lane.b32.xlu0 %v1292, 32
    %v1298 = vpop.permute.xlu0 %1297
    %v1301 = vadd.f32 %v1271, %v1296
    %v1302 = vadd.f32 %v1272, %v1298
    %vm1303 = vcmask 1040384
    %v1304 = vsel %vm1303, %v268, %v414
    %v1305 = vsel %vm1303, %v269, %v415
    %vm1306 = vcmask 1041408
    %v1307 = vsel %vm1306, %v1304, %v561
    %v1308 = vsel %vm1306, %v1305, %v562
    %vm1309 = vcmask 1042432
    %v1310 = vsel %vm1309, %v1307, %v709
    %v1311 = vsel %vm1309, %v1308, %v710
    %v1312 = vsel %vm36, %v1310, %v857
    %v1313 = vsel %vm36, %v1311, %v858
    %vm1314 = vcmask 1044480
    %v1315 = vsel %vm1314, %v1312, %v1005
    %v1316 = vsel %vm1314, %v1313, %v1006
    %vm1317 = vcmask 1045504
    %v1318 = vsel %vm1317, %v1315, %v1153
    %v1319 = vsel %vm1317, %v1316, %v1154
    %vm1320 = vcmask 1046528
    %v1321 = vsel %vm1320, %v1318, %v1301
    %v1322 = vsel %vm1320, %v1319, %v1302
    %v1323 = vld [vmem:[%s4] sm:$0xff]
    %v1324 = vld [vmem:[%s4 + $0x8] sm:$0xff]
    %v1325 = vld [vmem:[%s4 + $0x10] sm:$0xff]
    %v1326 = vld [vmem:[%s4 + $0x18] sm:$0xff]
    %v1327 = vld [vmem:[%s4 + $0x20] sm:$0x1]
    %v1328 = vlaneseq
    %v1329 = vshrl.u32 %v1328, 7
    %v1330 = vsub.s32 0, %v1329
    %v1331 = vrot.slane %v1327, %v1330
    %1334 = vrot.lane.b32.xlu0 %v1321, 64
    %v1335 = vpop.permute.xlu0 %1334
    %1336 = vrot.lane.b32.xlu0 %v1322, 64
    %v1337 = vpop.permute.xlu0 %1336
    %v1338 = vsel %vm129, %v1335, 0
    %v1340 = vsel %vm129, %v1337, 0
    %1342 = vmatprep.subr.mxu0 0.0
    %1343 = vmatpush1.msra.mxu0 %v1323
    %1344 = vmatprep.subr.mxu0 0.0
    %1345 = vmatpush1.msra.mxu0 %v1324
    %1346 = vmatprep.subr.mxu0 0.0
    %1347 = vmatpush1.msra.mxu0 %v1325
    %1348 = vmatprep.subr.mxu0 0.0
    %1349 = vmatpush1.msra.mxu0 %v1326
    %1350 = vmatprep.subr.mxu0 0.0
    %1351 = vmatpush1.msra.mxu0 0.0
    %1352 = vmatprep.subr.mxu0 0.0
    %1353 = vmatpush1.msra.mxu0 0.0
    %1354 = vmatprep.subr.mxu0 0.0
    %1355 = vmatpush1.msra.mxu0 0.0
    %1356 = vmatprep.subr.mxu0 0.0
    %1357 = vmatpush1.msra.mxu0 0.0
    %1358 = vmatprep.subr.mxu0 0.0
    %1359 = vmatpush1.msra.mxu0 0.0
    %1360 = vmatprep.subr.mxu0 0.0
    %1361 = vmatpush1.msra.mxu0 0.0
    %1362 = vmatprep.subr.mxu0 0.0
    %1363 = vmatpush1.msra.mxu0 0.0
    %1364 = vmatprep.subr.mxu0 0.0
    %1365 = vmatpush1.msra.mxu0 0.0
    %1366 = vmatprep.subr.mxu0 0.0
    %1367 = vmatpush1.msra.mxu0 0.0
    %1368 = vmatprep.subr.mxu0 0.0
    %1369 = vmatpush1.msra.mxu0 0.0
    %1370 = vmatprep.subr.mxu0 0.0
    %1371 = vmatpush1.msra.mxu0 0.0
    %1372 = vmatprep.subr.mxu0 0.0
    %1373 = vmatpush1.msra.mxu0 0.0
    %1374 = vmatprep.subr.mxu0 0.0
    %1375 = vmatpush1.msra.mxu0 0.0
    %1376 = vmatprep.subr.mxu0 0.0
    %1377 = vmatpush1.msra.mxu0 0.0
    %1378 = vmatprep.subr.mxu0 0.0
    %1379 = vmatpush1.msra.mxu0 0.0
    %1380 = vmatprep.subr.mxu0 0.0
    %1381 = vmatpush1.msra.mxu0 0.0
    %1382 = vmatprep.subr.mxu0 0.0
    %1383 = vmatpush1.msra.mxu0 0.0
    %1384 = vmatprep.subr.mxu0 0.0
    %1385 = vmatpush1.msra.mxu0 0.0
    %1386 = vmatprep.subr.mxu0 0.0
    %1387 = vmatpush1.msra.mxu0 0.0
    %1388 = vmatprep.subr.mxu0 0.0
    %1389 = vmatpush1.msra.mxu0 0.0
    %1390 = vmatprep.subr.mxu0 0.0
    %1391 = vmatpush1.msra.mxu0 0.0
    %1392 = vmatprep.subr.mxu0 0.0
    %1393 = vmatpush1.msra.mxu0 0.0
    %1394 = vmatprep.subr.mxu0 0.0
    %1395 = vmatpush1.msra.mxu0 0.0
    %1396 = vmatprep.subr.mxu0 0.0
    %1397 = vmatpush1.msra.mxu0 0.0
    %1398 = vmatprep.subr.mxu0 0.0
    %1399 = vmatpush1.msra.mxu0 0.0
    %1400 = vmatprep.subr.mxu0 0.0
    %1401 = vmatpush1.msra.mxu0 0.0
    %1402 = vmatprep.subr.mxu0 0.0
    %1403 = vmatpush1.msra.mxu0 0.0
    %1404 = vmatprep.subr.mxu0 0.0
    %1405 = vmatpush1.msra.mxu0 0.0
    %1406 = vmatprep.mubr.f32.mxu0 0.0
    %1407 = vmatmul.mubr.f32.gmra.mrb[0].mxu0 %v1338
    %v1408 = vpop.f32.mrb[0].mxu0
    %v1409 = vadd.f32 %v1331, %v1408
    %v1410 = vpop.f32.mrb[0].mxu0
    %1411 = vmatprep.mubr.f32.mxu0 0.0
    %1412 = vmatmul.mubr.f32.gmra.mrb[0].mxu0 %v1340
    %v1413 = vpop.f32.mrb[0].mxu0
    %v1414 = vadd.f32 %v1331, %v1413
    %v1415 = vpop.f32.mrb[0].mxu0
    %1416 = vdwg.mxu0
    %vm1417 = vcmp.ge.f32.partialorder %v1409, 0.0
    %vm1418 = vcmp.ge.f32.partialorder %v1414, 0.0
    %v1419 = vmul.f32 %v1409, 0.01
    %v1420 = vmul.f32 %v1414, 0.01
    %v1421 = vsel %vm1417, %v1409, %v1419
    %v1422 = vsel %vm1418, %v1414, %v1420
    %s1423 = scalar_lea.vmem %s4, 40
    %v1424 = vld [vmem:[%s1423] sm:$0xff]
    %v1425 = vld [vmem:[%s1423 + $0x8] sm:$0xff]
    %v1426 = vld [vmem:[%s1423 + $0x10] sm:$0xff]
    %v1427 = vld [vmem:[%s1423 + $0x18] sm:$0xff]
    %v1428 = vld [vmem:[%s1423 + $0x20] sm:$0x1]
    %v1429 = vlaneseq
    %v1430 = vshrl.u32 %v1429, 7
    %v1431 = vsub.s32 0, %v1430
    %v1432 = vrot.slane %v1428, %v1431
    %v1434 = vsel %vm129, %v1421, 0
    %v1437 = vsel %vm129, %v1422, 0
    %1439 = vmatprep.subr.mxu0 0.0
    %1440 = vmatpush1.msra.mxu0 %v1424
    %1441 = vmatprep.subr.mxu0 0.0
    %1442 = vmatpush1.msra.mxu0 %v1425
    %1443 = vmatprep.subr.mxu0 0.0
    %1444 = vmatpush1.msra.mxu0 %v1426
    %1445 = vmatprep.subr.mxu0 0.0
    %1446 = vmatpush1.msra.mxu0 %v1427
    %1447 = vmatprep.subr.mxu0 0.0
    %1448 = vmatpush1.msra.mxu0 0.0
    %1449 = vmatprep.subr.mxu0 0.0
    %1450 = vmatpush1.msra.mxu0 0.0
    %1451 = vmatprep.subr.mxu0 0.0
    %1452 = vmatpush1.msra.mxu0 0.0
    %1453 = vmatprep.subr.mxu0 0.0
    %1454 = vmatpush1.msra.mxu0 0.0
    %1455 = vmatprep.subr.mxu0 0.0
    %1456 = vmatpush1.msra.mxu0 0.0
    %1457 = vmatprep.subr.mxu0 0.0
    %1458 = vmatpush1.msra.mxu0 0.0
    %1459 = vmatprep.subr.mxu0 0.0
    %1460 = vmatpush1.msra.mxu0 0.0
    %1461 = vmatprep.subr.mxu0 0.0
    %1462 = vmatpush1.msra.mxu0 0.0
    %1463 = vmatprep.subr.mxu0 0.0
    %1464 = vmatpush1.msra.mxu0 0.0
    %1465 = vmatprep.subr.mxu0 0.0
    %1466 = vmatpush1.msra.mxu0 0.0
    %1467 = vmatprep.subr.mxu0 0.0
    %1468 = vmatpush1.msra.mxu0 0.0
    %1469 = vmatprep.subr.mxu0 0.0
    %1470 = vmatpush1.msra.mxu0 0.0
    %1471 = vmatprep.subr.mxu0 0.0
    %1472 = vmatpush1.msra.mxu0 0.0
    %1473 = vmatprep.subr.mxu0 0.0
    %1474 = vmatpush1.msra.mxu0 0.0
    %1475 = vmatprep.subr.mxu0 0.0
    %1476 = vmatpush1.msra.mxu0 0.0
    %1477 = vmatprep.subr.mxu0 0.0
    %1478 = vmatpush1.msra.mxu0 0.0
    %1479 = vmatprep.subr.mxu0 0.0
    %1480 = vmatpush1.msra.mxu0 0.0
    %1481 = vmatprep.subr.mxu0 0.0
    %1482 = vmatpush1.msra.mxu0 0.0
    %1483 = vmatprep.subr.mxu0 0.0
    %1484 = vmatpush1.msra.mxu0 0.0
    %1485 = vmatprep.subr.mxu0 0.0
    %1486 = vmatpush1.msra.mxu0 0.0
    %1487 = vmatprep.subr.mxu0 0.0
    %1488 = vmatpush1.msra.mxu0 0.0
    %1489 = vmatprep.subr.mxu0 0.0
    %1490 = vmatpush1.msra.mxu0 0.0
    %1491 = vmatprep.subr.mxu0 0.0
    %1492 = vmatpush1.msra.mxu0 0.0
    %1493 = vmatprep.subr.mxu0 0.0
    %1494 = vmatpush1.msra.mxu0 0.0
    %1495 = vmatprep.subr.mxu0 0.0
    %1496 = vmatpush1.msra.mxu0 0.0
    %1497 = vmatprep.subr.mxu0 0.0
    %1498 = vmatpush1.msra.mxu0 0.0
    %1499 = vmatprep.subr.mxu0 0.0
    %1500 = vmatpush1.msra.mxu0 0.0
    %1501 = vmatprep.subr.mxu0 0.0
    %1502 = vmatpush1.msra.mxu0 0.0
    %1503 = vmatprep.mubr.f32.mxu0 0.0
    %1504 = vmatmul.mubr.f32.gmra.mrb[0].mxu0 %v1434
    %v1505 = vpop.f32.mrb[0].mxu0
    %v1506 = vadd.f32 %v1432, %v1505
    %v1507 = vpop.f32.mrb[0].mxu0
    %1508 = vmatprep.mubr.f32.mxu0 0.0
    %1509 = vmatmul.mubr.f32.gmra.mrb[0].mxu0 %v1437
    %v1510 = vpop.f32.mrb[0].mxu0
    %v1511 = vadd.f32 %v1432, %v1510
    %v1512 = vpop.f32.mrb[0].mxu0
    %1513 = vdwg.mxu0
    %vm1514 = vcmask 130048
    %1515 = vst.msk [vmem:[#allocation2] sm:$0xff] %vm1514, %v1506
    %1516 = vst.msk [vmem:[#allocation2 + $0x8] sm:$0xff] %vm1514, %v1511
    // Predicated region
    $region22: #{time_series_encoder_forward.1} parent=1 // pred_check
      _
    $region23: #{time_series_encoder_forward.1} parent=1 // pred_check_branch
      %1518 = sbr.rel (0) target = $region25
    $region24: #{time_series_encoder_forward.1} parent=1 // pred_region
      %s1520 = ssub.s32 256, 256
      %1521 = vsyncadd [#allocation3], %s1520
      %s1522 = sshll.u32 [#allocation2], 4
      %s1523 = int_to_ptr.vmem [resolvable:$true] %s1522
      %1528 = dma.vmem_to_hbm [thread:$0]  %s1523, 256, %s5, [#allocation3], 128, 128, 8
    $region25: #{time_series_encoder_forward.1} parent=1 // pred_fallthru
      _
    // Predicated region
    $region26: #{time_series_encoder_forward.1} parent=1 // pred_check
      _
    $region27: #{time_series_encoder_forward.1} parent=1 // pred_check_branch
      %1530 = sbr.rel (0) target = $region29
    $region28: #{time_series_encoder_forward.1} parent=1 // pred_region
      %1531 = dma.done [#allocation3], 256
    $region29: #{time_series_encoder_forward.1} parent=1 // pred_fallthru
      _
    %1532 = vsyncpa [#allocation3], 1

</llo_original>
